<compile_context>
chip_gen: v6e
topology: v6e:2x2x1
jax: 0.10.0
libtpu: 0.0.40
codegen_flags: <defaults>
</compile_context>

<pallas_src>
import jax
import jax.numpy as jnp
from jax.experimental import pallas as pl
from jax.experimental.pallas import tpu as pltpu

_NEG_BIG = -1e30  # "minus infinity" that stays NaN-free under arithmetic


def _coxph_kernel(pred_ref, event_ref, out_ref,
                  m_ref, l_ref, acc_ref, tri_ref, rtri_ref):
    k = pl.program_id(0)
    r, lanes = pred_ref.shape

    @pl.when(k == 0)
    def _init():
        # Running (max, scaled-sum) carry, lane-dense loss accumulator, output.
        m_ref[...] = jnp.full(m_ref.shape, _NEG_BIG, jnp.float32)
        l_ref[...] = jnp.zeros(l_ref.shape, jnp.float32)
        acc_ref[...] = jnp.zeros(acc_ref.shape, jnp.float32)
        out_ref[...] = jnp.zeros(out_ref.shape, jnp.float32)
        # Inclusive column-prefix constant: tri[j, i] = 1 iff j <= i.
        jj = jax.lax.broadcasted_iota(jnp.int32, tri_ref.shape, 0)
        ii = jax.lax.broadcasted_iota(jnp.int32, tri_ref.shape, 1)
        tri_ref[...] = (jj <= ii).astype(jnp.float32)
        # Strict row-prefix constant: rtri[i, j] = 1 iff j < i.
        rr = jax.lax.broadcasted_iota(jnp.int32, rtri_ref.shape, 0)
        cc = jax.lax.broadcasted_iota(jnp.int32, rtri_ref.shape, 1)
        rtri_ref[...] = (cc < rr).astype(jnp.float32)

    p = pred_ref[...]      # (r, lanes) time-sorted risk scores
    ev = event_ref[...]    # (r, lanes) event indicator (0/1); pads are 0

    prev_m = m_ref[...]    # (1, 1) running max over previous blocks
    prev_l = l_ref[...]    # (1, 1) running sum of exp(pred - prev_m)

    block_max = jnp.max(p, keepdims=True)          # (1, 1)
    new_m = jnp.maximum(prev_m, block_max)         # (1, 1)
    e = jnp.exp(p - new_m)                         # (r, lanes): O(r*lanes) exps

    # Per-row inclusive prefix on the MXU: prefix[i, c] = sum_{c' <= c} e[i, c'].
    prefix = jnp.dot(e, tri_ref[...],
                     precision=jax.lax.Precision.HIGHEST,
                     preferred_element_type=jnp.float32)    # (r, lanes)

    # Row totals (last prefix column), broadcast lane-dense, then the exclusive
    # over-rows prefix via a small strict-triangular matmul (lane-dense output).
    rowsum = prefix[:, lanes - 1:lanes]                      # (r, 1)
    rowsum_bc = jnp.broadcast_to(rowsum, (r, lanes))         # (r, lanes)
    row_excl = jnp.dot(rtri_ref[...], rowsum_bc,
                       precision=jax.lax.Precision.HIGHEST,
                       preferred_element_type=jnp.float32)   # (r, lanes)

    cum = prefix + row_excl                                  # in-block inclusive cumsum of e
    block_total = cum[r - 1:r, lanes - 1:lanes]              # (1, 1) = sum(e) over block

    alpha = jnp.exp(prev_m - new_m)                          # (1, 1)
    carried = prev_l * alpha                                 # previous blocks, rescaled
    lse = new_m + jnp.log(carried + cum)                     # (r, lanes) log-cumsum-exp

    # Lane-dense accumulation of  sum_i event_i * (lse_i - pred_i)  (pads: ev = 0).
    acc_ref[...] += (lse - p) * ev

    # Carry for the next block.
    m_ref[...] = new_m
    l_ref[...] = carried + block_total

    @pl.when(k == pl.num_programs(0) - 1)
    def _finalize():
        # Single cross-lane reduce + single narrow (1,1) store for the whole call.
        out_ref[...] = jnp.sum(acc_ref[...], keepdims=True)


def coxph_loss(pred, time, event, *, block_rows=256, lanes=128):
    """Cox PH loss: -(1/N_events) * sum_{event=1} (pred - logcumsumexp(pred)) after time-desc sort."""
    n = pred.shape[0]

    # Glue: sort by time (descending) and gather — stays in XLA.
    order = jnp.argsort(-time)
    pred_s = pred[order].astype(jnp.float32)
    event_s = event[order].astype(jnp.float32)

    # 2D (rows, 128) layout. Pads sit strictly at the tail with a huge negative
    # pred and event = 0, so they never enter a real row's risk set and never
    # move the running max.
    n_rows_min = -(-n // lanes)                           # ceil(n / lanes)
    r = min(block_rows, ((n_rows_min + 7) // 8) * 8)      # rows per grid step, multiple of 8
    n_rows = ((n_rows_min + r - 1) // r) * r
    n_pad = n_rows * lanes
    n_blocks = n_rows // r

    pred_p = (jnp.full((n_pad,), _NEG_BIG, jnp.float32)
              .at[:n].set(pred_s).reshape(n_rows, lanes))
    event_p = (jnp.zeros((n_pad,), jnp.float32)
               .at[:n].set(event_s).reshape(n_rows, lanes))

    neg_sum = pl.pallas_call(
        _coxph_kernel,
        out_shape=jax.ShapeDtypeStruct((1, 1), jnp.float32),
        grid_spec=pltpu.PrefetchScalarGridSpec(
            num_scalar_prefetch=0,
            grid=(n_blocks,),
            in_specs=[
                pl.BlockSpec((r, lanes), lambda k: (k, 0)),   # pred rows
                pl.BlockSpec((r, lanes), lambda k: (k, 0)),   # event rows
            ],
            out_specs=pl.BlockSpec((1, 1), lambda k: (0, 0)),  # resident accumulator
            scratch_shapes=[
                pltpu.VMEM((1, 1), jnp.float32),          # running max m
                pltpu.VMEM((1, 1), jnp.float32),          # running scaled sum l
                pltpu.VMEM((r, lanes), jnp.float32),      # lane-dense loss accumulator
                pltpu.VMEM((lanes, lanes), jnp.float32),  # column-prefix tri (built in-kernel)
                pltpu.VMEM((r, r), jnp.float32),          # strict row-prefix tri (built in-kernel)
            ],
        ),
        # The block axis carries the (m, l) running scan -> must be "arbitrary".
        compiler_params=pltpu.CompilerParams(
            dimension_semantics=("arbitrary",)),
        cost_estimate=pl.CostEstimate(
            flops=n_blocks * (2 * r * lanes * lanes + 2 * r * r * lanes + 10 * r * lanes),
            transcendentals=n_blocks * (2 * r * lanes + 2),
            bytes_accessed=4 * (2 * n_pad + 1)),
    )(pred_p, event_p)

    # Same semantics as the PyTorch module (all-censored batches give inf/NaN there too).
    num_events = jnp.sum(event_s)
    return neg_sum[0, 0] / num_events


def coxph_loss_ref(pred, time, event):
    """Pure-JAX reference mirroring the PyTorch module."""
    order = jnp.argsort(-time)
    p = pred[order].astype(jnp.float32)
    e = event[order].astype(jnp.float32)
    m = jnp.max(p)
    risk_set_log = jnp.log(jnp.cumsum(jnp.exp(p - m))) + m
    anchor = p - risk_set_log
    return -jnp.sum(anchor * e) / jnp.sum(e)


def _make_inputs(key, n):
    k1, k2, k3 = jax.random.split(key, 3)
    pred = jax.random.normal(k1, (n,), dtype=jnp.float32)
    time = jax.random.uniform(k2, (n,), dtype=jnp.float32, minval=0.0, maxval=10.0)
    event = (jax.random.uniform(k3, (n,)) > 0.4).astype(jnp.float32)
    event = event.at[0].set(1.0)   # guarantee >= 1 event
    return pred, time, event


if __name__ == "__main__":
    # Tiny single-block case (N=16 -> one (8, 128) block).
    pred, time, event = _make_inputs(jax.random.PRNGKey(0), 16)
    out = jax.block_until_ready(coxph_loss(pred, time, event))
    ref = jax.block_until_ready(coxph_loss_ref(pred, time, event))
    assert jnp.isfinite(out), "kernel produced non-finite loss"
    assert jnp.allclose(out, ref, rtol=1e-5, atol=1e-5), (out, ref)

    # Multi-row single-block case (N=300 -> one (8, 128) block, 3 real rows).
    pred2, time2, event2 = _make_inputs(jax.random.PRNGKey(0), 300)
    out2 = jax.block_until_ready(coxph_loss(pred2, time2, event2))
    ref2 = jax.block_until_ready(coxph_loss_ref(pred2, time2, event2))
    assert jnp.isfinite(out2), "kernel produced non-finite loss (single block, multi-row)"
    assert jnp.allclose(out2, ref2, rtol=1e-5, atol=1e-5), (out2, ref2)

    # Multi-block case (N=2500, block_rows=8 -> 3 grid steps) to exercise the
    # inter-block (m, l) online carry and the resident accumulators.
    pred3, time3, event3 = _make_inputs(jax.random.PRNGKey(0), 2500)
    out3 = jax.block_until_ready(coxph_loss(pred3, time3, event3, block_rows=8))
    ref3 = jax.block_until_ready(coxph_loss_ref(pred3, time3, event3))
    assert jnp.isfinite(out3), "kernel produced non-finite loss (multi-block)"
    assert jnp.allclose(out3, ref3, rtol=1e-4, atol=1e-4), (out3, ref3)

    print("KERNEL_OK")
</pallas_src>

<mosaic_0001>
module attributes {stable_mosaic.version = 11 : i64} {
  func.func @_coxph_kernel(%arg0: i32, %arg1: memref<8x128xf32, #tpu.memory_space<vmem>>, %arg2: memref<8x128xf32, #tpu.memory_space<vmem>>, %arg3: memref<1x1xf32, #tpu.memory_space<vmem>>, %arg4: memref<1x1xf32, #tpu.memory_space<vmem>>, %arg5: memref<1x1xf32, #tpu.memory_space<vmem>>, %arg6: memref<8x128xf32, #tpu.memory_space<vmem>>, %arg7: memref<128x128xf32, #tpu.memory_space<vmem>>, %arg8: memref<8x8xf32, #tpu.memory_space<vmem>>) attributes {dimension_semantics = [#tpu.dimension_semantics<arbitrary>], iteration_bounds = array<i64: 1>, scalar_prefetch = 0 : i64, scratch_operands = 5 : i64, tpu.core_type = #tpu.core_type<tc>, window_params = [{transform_indices = @transform_0, window_bounds = array<i64: 8, 128>}, {transform_indices = @transform_1, window_bounds = array<i64: 8, 128>}, {pipeline_mode = #tpu.pipeline_mode<synchronous>, transform_indices = @transform_2, window_bounds = array<i64: 1, 1>}]} {
    %c0_i32 = arith.constant 0 : i32
    %0 = arith.cmpi eq, %arg0, %c0_i32 : i32
    %1 = arith.extui %0 : i1 to i32
    %c0_i32_0 = arith.constant 0 : i32
    %2 = arith.cmpi ne, %1, %c0_i32_0 : i32
    scf.if %2 {
      %cst_24 = arith.constant -1.000000e+30 : f32
      %44 = vector.broadcast %cst_24 : f32 to vector<1x1xf32>
      %c0_25 = arith.constant 0 : index
      %c0_26 = arith.constant 0 : index
      %45 = vector.load %arg4[%c0_25, %c0_26] : memref<1x1xf32, #tpu.memory_space<vmem>>, vector<1x1xf32>
      tpu.vector_store %arg4[%c0_25, %c0_26], %44 {strides = array<i32>} : memref<1x1xf32, #tpu.memory_space<vmem>>, vector<1x1xf32>,
      %cst_27 = arith.constant 0.000000e+00 : f32
      %46 = vector.broadcast %cst_27 : f32 to vector<1x1xf32>
      %c0_28 = arith.constant 0 : index
      %c0_29 = arith.constant 0 : index
      %47 = vector.load %arg5[%c0_28, %c0_29] : memref<1x1xf32, #tpu.memory_space<vmem>>, vector<1x1xf32>
      tpu.vector_store %arg5[%c0_28, %c0_29], %46 {strides = array<i32>} : memref<1x1xf32, #tpu.memory_space<vmem>>, vector<1x1xf32>,
      %cst_30 = arith.constant 0.000000e+00 : f32
      %48 = vector.broadcast %cst_30 : f32 to vector<8x128xf32>
      %c0_31 = arith.constant 0 : index
      %c0_32 = arith.constant 0 : index
      %49 = vector.load %arg6[%c0_31, %c0_32] : memref<8x128xf32, #tpu.memory_space<vmem>>, vector<8x128xf32>
      tpu.vector_store %arg6[%c0_31, %c0_32], %48 {strides = array<i32>} : memref<8x128xf32, #tpu.memory_space<vmem>>, vector<8x128xf32>,
      %cst_33 = arith.constant 0.000000e+00 : f32
      %50 = vector.broadcast %cst_33 : f32 to vector<1x1xf32>
      %c0_34 = arith.constant 0 : index
      %c0_35 = arith.constant 0 : index
      %51 = vector.load %arg3[%c0_34, %c0_35] : memref<1x1xf32, #tpu.memory_space<vmem>>, vector<1x1xf32>
      tpu.vector_store %arg3[%c0_34, %c0_35], %50 {strides = array<i32>} : memref<1x1xf32, #tpu.memory_space<vmem>>, vector<1x1xf32>,
      %52 = tpu.iota {dimensions = array<i32: 0>} : vector<128x128xi32>
      %53 = tpu.iota {dimensions = array<i32: 1>} : vector<128x128xi32>
      %54 = arith.cmpi sle, %52, %53 : vector<128x128xi32>
      %55 = arith.extui %54 : vector<128x128xi1> to vector<128x128xi32>
      %56 = arith.sitofp %55 : vector<128x128xi32> to vector<128x128xf32>
      %c0_36 = arith.constant 0 : index
      %c0_37 = arith.constant 0 : index
      %57 = vector.load %arg7[%c0_36, %c0_37] : memref<128x128xf32, #tpu.memory_space<vmem>>, vector<128x128xf32>
      tpu.vector_store %arg7[%c0_36, %c0_37], %56 {strides = array<i32>} : memref<128x128xf32, #tpu.memory_space<vmem>>, vector<128x128xf32>,
      %58 = tpu.iota {dimensions = array<i32: 0>} : vector<8x8xi32>
      %59 = tpu.iota {dimensions = array<i32: 1>} : vector<8x8xi32>
      %60 = arith.cmpi slt, %59, %58 : vector<8x8xi32>
      %61 = arith.extui %60 : vector<8x8xi1> to vector<8x8xi32>
      %62 = arith.sitofp %61 : vector<8x8xi32> to vector<8x8xf32>
      %c0_38 = arith.constant 0 : index
      %c0_39 = arith.constant 0 : index
      %63 = vector.load %arg8[%c0_38, %c0_39] : memref<8x8xf32, #tpu.memory_space<vmem>>, vector<8x8xf32>
      tpu.vector_store %arg8[%c0_38, %c0_39], %62 {strides = array<i32>} : memref<8x8xf32, #tpu.memory_space<vmem>>, vector<8x8xf32>,
    } else {
    }
    %c0 = arith.constant 0 : index
    %c0_1 = arith.constant 0 : index
    %3 = vector.load %arg1[%c0, %c0_1] : memref<8x128xf32, #tpu.memory_space<vmem>>, vector<8x128xf32>
    %c0_2 = arith.constant 0 : index
    %c0_3 = arith.constant 0 : index
    %4 = vector.load %arg2[%c0_2, %c0_3] : memref<8x128xf32, #tpu.memory_space<vmem>>, vector<8x128xf32>
    %c0_4 = arith.constant 0 : index
    %c0_5 = arith.constant 0 : index
    %5 = vector.load %arg4[%c0_4, %c0_5] : memref<1x1xf32, #tpu.memory_space<vmem>>, vector<1x1xf32>
    %c0_6 = arith.constant 0 : index
    %c0_7 = arith.constant 0 : index
    %6 = vector.load %arg5[%c0_6, %c0_7] : memref<1x1xf32, #tpu.memory_space<vmem>>, vector<1x1xf32>
    %7 = vector.shape_cast %3 : vector<8x128xf32> to vector<1x8x128xf32>
    %cst = arith.constant dense<0xFF800000> : vector<1xf32>
    %8 = vector.multi_reduction <maximumf>, %7, %cst [1, 2] : vector<1x8x128xf32> to vector<1xf32>
    %9 = vector.shape_cast %8 : vector<1xf32> to vector<1x1x1xf32>
    %10 = vector.extract %9[0, 0, 0] : f32 from vector<1x1x1xf32>
    %11 = vector.broadcast %10 : f32 to vector<1x1xf32>
    %12 = arith.maximumf %5, %11 : vector<1x1xf32>
    %13 = vector.broadcast %12 : vector<1x1xf32> to vector<8x128xf32>
    %14 = arith.subf %3, %13 : vector<8x128xf32>
    %15 = math.exp %14 : vector<8x128xf32>
    %c0_8 = arith.constant 0 : index
    %c0_9 = arith.constant 0 : index
    %16 = vector.load %arg7[%c0_8, %c0_9] : memref<128x128xf32, #tpu.memory_space<vmem>>, vector<128x128xf32>
    %cst_10 = arith.constant dense<0.000000e+00> : vector<8x128xf32>
    %17 = tpu.matmul %15, %16, %cst_10 {dimension_numbers = #tpu.dot_dimension_numbers<[1], [0], [0], [1], [0, 0, 1, 1], [], []>, precision = #tpu.contract_precision<fp32>} : vector<8x128xf32>, vector<128x128xf32>, vector<8x128xf32> -> vector<8x128xf32>
    %18 = vector.extract_strided_slice %17 {offsets = [0, 127], sizes = [8, 1], strides = [1, 1]} : vector<8x128xf32> to vector<8x1xf32>
    %19 = vector.shape_cast %18 : vector<8x1xf32> to vector<8x1xf32>
    %20 = vector.broadcast %19 : vector<8x1xf32> to vector<8x128xf32>
    %c0_11 = arith.constant 0 : index
    %c0_12 = arith.constant 0 : index
    %21 = vector.load %arg8[%c0_11, %c0_12] : memref<8x8xf32, #tpu.memory_space<vmem>>, vector<8x8xf32>
    %cst_13 = arith.constant dense<0.000000e+00> : vector<8x128xf32>
    %22 = tpu.matmul %21, %20, %cst_13 {dimension_numbers = #tpu.dot_dimension_numbers<[1], [0], [0], [1], [0, 0, 1, 1], [], []>, precision = #tpu.contract_precision<fp32>} : vector<8x8xf32>, vector<8x128xf32>, vector<8x128xf32> -> vector<8x128xf32>
    %23 = arith.addf %17, %22 : vector<8x128xf32>
    %24 = vector.extract_strided_slice %23 {offsets = [7, 127], sizes = [1, 1], strides = [1, 1]} : vector<8x128xf32> to vector<1x1xf32>
    %25 = arith.subf %5, %12 : vector<1x1xf32>
    %26 = math.exp %25 : vector<1x1xf32>
    %27 = arith.mulf %6, %26 : vector<1x1xf32>
    %28 = vector.broadcast %27 : vector<1x1xf32> to vector<8x128xf32>
    %29 = arith.addf %28, %23 : vector<8x128xf32>
    %30 = math.log %29 : vector<8x128xf32>
    %31 = vector.broadcast %12 : vector<1x1xf32> to vector<8x128xf32>
    %32 = arith.addf %31, %30 : vector<8x128xf32>
    %c0_14 = arith.constant 0 : index
    %c0_15 = arith.constant 0 : index
    %33 = vector.load %arg6[%c0_14, %c0_15] : memref<8x128xf32, #tpu.memory_space<vmem>>, vector<8x128xf32>
    %34 = arith.subf %32, %3 : vector<8x128xf32>
    %35 = arith.mulf %34, %4 : vector<8x128xf32>
    %36 = arith.addf %33, %35 : vector<8x128xf32>
    %c0_16 = arith.constant 0 : index
    %c0_17 = arith.constant 0 : index
    %37 = vector.load %arg6[%c0_16, %c0_17] : memref<8x128xf32, #tpu.memory_space<vmem>>, vector<8x128xf32>
    tpu.vector_store %arg6[%c0_16, %c0_17], %36 {strides = array<i32>} : memref<8x128xf32, #tpu.memory_space<vmem>>, vector<8x128xf32>,
    %c0_18 = arith.constant 0 : index
    %c0_19 = arith.constant 0 : index
    %38 = vector.load %arg4[%c0_18, %c0_19] : memref<1x1xf32, #tpu.memory_space<vmem>>, vector<1x1xf32>
    tpu.vector_store %arg4[%c0_18, %c0_19], %12 {strides = array<i32>} : memref<1x1xf32, #tpu.memory_space<vmem>>, vector<1x1xf32>,
    %39 = arith.addf %27, %24 : vector<1x1xf32>
    %c0_20 = arith.constant 0 : index
    %c0_21 = arith.constant 0 : index
    %40 = vector.load %arg5[%c0_20, %c0_21] : memref<1x1xf32, #tpu.memory_space<vmem>>, vector<1x1xf32>
    tpu.vector_store %arg5[%c0_20, %c0_21], %39 {strides = array<i32>} : memref<1x1xf32, #tpu.memory_space<vmem>>, vector<1x1xf32>,
    %c0_i32_22 = arith.constant 0 : i32
    %41 = arith.cmpi eq, %arg0, %c0_i32_22 : i32
    %42 = arith.extui %41 : i1 to i32
    %c0_i32_23 = arith.constant 0 : i32
    %43 = arith.cmpi ne, %42, %c0_i32_23 : i32
    scf.if %43 {
      %c0_24 = arith.constant 0 : index
      %c0_25 = arith.constant 0 : index
      %44 = vector.load %arg6[%c0_24, %c0_25] : memref<8x128xf32, #tpu.memory_space<vmem>>, vector<8x128xf32>
      %45 = vector.shape_cast %44 : vector<8x128xf32> to vector<1x8x128xf32>
      %cst_26 = arith.constant dense<0.000000e+00> : vector<1xf32>
      %46 = vector.multi_reduction <add>, %45, %cst_26 [1, 2] : vector<1x8x128xf32> to vector<1xf32>
      %47 = vector.shape_cast %46 : vector<1xf32> to vector<1x1x1xf32>
      %48 = vector.extract %47[0, 0, 0] : f32 from vector<1x1x1xf32>
      %49 = vector.broadcast %48 : f32 to vector<1x1xf32>
      %c0_27 = arith.constant 0 : index
      %c0_28 = arith.constant 0 : index
      %50 = vector.load %arg3[%c0_27, %c0_28] : memref<1x1xf32, #tpu.memory_space<vmem>>, vector<1x1xf32>
      tpu.vector_store %arg3[%c0_27, %c0_28], %49 {strides = array<i32>} : memref<1x1xf32, #tpu.memory_space<vmem>>, vector<1x1xf32>,
    } else {
    }
    return
  }
  func.func @transform_0(%arg0: i32) -> (i32, i32) {
    %c0_i32 = arith.constant 0 : i32
    %c0_i32_0 = arith.constant 0 : i32
    return %arg0, %c0_i32 : i32, i32
  }
  func.func @transform_1(%arg0: i32) -> (i32, i32) {
    %c0_i32 = arith.constant 0 : i32
    %c0_i32_0 = arith.constant 0 : i32
    return %arg0, %c0_i32 : i32, i32
  }
  func.func @transform_2(%arg0: i32) -> (i32, i32) {
    %c0_i32 = arith.constant 0 : i32
    %c0_i32_0 = arith.constant 0 : i32
    %c0_i32_1 = arith.constant 0 : i32
    return %c0_i32, %c0_i32_0 : i32, i32
  }
}

</mosaic_0001>

<llo_original>
// kernel: tpu_custom_call.1
$region0: #{tpu_custom_call.1}
  #allocation0 [shape = 'u32[]', space=smem, size = 0x4, offset = 0x4, fixed_abs, tag = 'smem constant byte address 0x4 - core index']
  #allocation1 [shape = 'u32[144,128]{1,0:T(1,128)}', space=vmem, size = 0x12000, scoped, tag = 'internal scratch']
  #allocation2 [shape = 'f32[1,1]{1,0:T(1,128)}', space=vmem, size = 0x200, scoped, tag = 'scratch operand']
  #allocation3 [shape = 'f32[1,1]{1,0:T(1,128)}', space=vmem, size = 0x200, scoped, tag = 'scratch operand']
  #allocation4 [shape = 'f32[8,128]{1,0:T(8,128)}', space=vmem, size = 0x1000, scoped, tag = 'scratch operand']
  #allocation5 [shape = 'f32[128,128]{1,0:T(8,128)}', space=vmem, size = 0x10000, scoped, tag = 'scratch operand']
  #allocation6 [shape = 'f32[8,8]{1,0:T(8,128)}', space=vmem, size = 0x1000, scoped, tag = 'scratch operand']
  %s0 = inlined_call_operand.hbm [shape: f32[8,128], index: 0, kind: input, shape index: {}]
  %s1 = inlined_call_operand.hbm [shape: f32[8,128], index: 1, kind: input, shape index: {}]
  %s2 = inlined_call_operand.hbm [shape: f32[1,1], index: 2, kind: output, shape index: {}]
  %s3 = sld [smem:[#allocation0]]
  $region34: #{tpu_custom_call.1} parent=0
    _
  %s5 = ssub.s32 1, %s3
  %s6 = scalar_select 0, %s5, %s3
  $region1: #{tpu_custom_call.1} parent=0
    #allocation7 [shape = 'u8[4096]{0}', space=vmem, size = 0x1000, scoped, tag = 'input window, operand 0, single buffered']
    #allocation8 [shape = 's32[1]{0}', space=sflag, size = 0x4, scoped, tag = 'scoped memory for tpu_custom_call.1']
    #allocation9 [shape = 's32[1]{0}', space=sflag, size = 0x4, scoped, tag = 'scoped memory for tpu_custom_call.1']
    #allocation10 [shape = 'u8[4096]{0}', space=vmem, size = 0x1000, scoped, tag = 'input window, operand 1, single buffered']
    #allocation11 [shape = 's32[1]{0}', space=sflag, size = 0x4, scoped, tag = 'scoped memory for tpu_custom_call.1']
    #allocation12 [shape = 'u8[512]{0}', space=vmem, size = 0x400, scoped, tag = 'output window, operand 0, single buffered']
    %7 = vsyncpa [#allocation8], 0
    %8 = vsyncpa [#allocation11], 0
    %9 = vsyncpa [#allocation9], 0
    // Predicated region
    $region2: #{tpu_custom_call.1} parent=1 // pred_check
      _
    $region3: #{tpu_custom_call.1} parent=1 // pred_check_branch
      %11 = sbr.rel (0) target = $region5
    $region4: #{tpu_custom_call.1} parent=1 // pred_region
      %s13 = ssub.s32 128, 128
      %14 = vsyncadd [#allocation8], %s13
      %s16 = sshll.u32 [#allocation7], 4
      %s17 = int_to_ptr.vmem [resolvable:$true] %s16
      %19 = dma.hbm_to_vmem [thread:$0]  %s0, 128, %s17, [#allocation8]
    $region5: #{tpu_custom_call.1} parent=1 // pred_fallthru
      _
    // Predicated region
    $region6: #{tpu_custom_call.1} parent=1 // pred_check
      _
    $region7: #{tpu_custom_call.1} parent=1 // pred_check_branch
      %21 = sbr.rel (0) target = $region9
    $region8: #{tpu_custom_call.1} parent=1 // pred_region
      %s23 = ssub.s32 128, 128
      %24 = vsyncadd [#allocation11], %s23
      %s26 = sshll.u32 [#allocation10], 4
      %s27 = int_to_ptr.vmem [resolvable:$true] %s26
      %29 = dma.hbm_to_vmem [thread:$0]  %s1, 128, %s27, [#allocation11]
    $region9: #{tpu_custom_call.1} parent=1 // pred_fallthru
      _
    // Predicated region
    $region10: #{tpu_custom_call.1} parent=1 // pred_check
      _
    $region11: #{tpu_custom_call.1} parent=1 // pred_check_branch
      %31 = sbr.rel (0) target = $region13
    $region12: #{tpu_custom_call.1} parent=1 // pred_region
      %32 = dma.done [#allocation8], 128
    $region13: #{tpu_custom_call.1} parent=1 // pred_fallthru
      _
    // Predicated region
    $region14: #{tpu_custom_call.1} parent=1 // pred_check
      _
    $region15: #{tpu_custom_call.1} parent=1 // pred_check_branch
      %34 = sbr.rel (0) target = $region17
    $region16: #{tpu_custom_call.1} parent=1 // pred_region
      %35 = dma.done [#allocation11], 128
    $region17: #{tpu_custom_call.1} parent=1 // pred_fallthru
      _
    %p36 = scmp.eq.s32.totalorder 0, 0
    // Predicated region
    $region18: #{tpu_custom_call.1} parent=1 // pred_check
      %p37 = pneg %p36
    $region19: #{tpu_custom_call.1} parent=1 // pred_check_branch
      %39 = sbr.rel (%p37) target = $region21
    $region20: #{tpu_custom_call.1} parent=1 // pred_region
      %vm40 = vcmask 0
      %41 = vst.msk [vmem:[#allocation2] sm:$0x1] %vm40, -1e+30
      %42 = vst.msk [vmem:[#allocation3] sm:$0x1] %vm40, 0.0
      %43 = vst [vmem:[#allocation4] sm:$0xff] 0.0
      %44 = vst.msk [vmem:[#allocation12] sm:$0x1] %vm40, 0.0
      %v45 = vlaneseq
      %v46 = vshrl.u32 %v45, 7
      %v47 = vadd.s32 %v46, 8
      %v48 = vadd.s32 %v46, 16
      %v49 = vadd.s32 %v46, 24
      %v50 = vadd.s32 %v46, 32
      %v51 = vadd.s32 %v46, 40
      %v52 = vadd.s32 %v46, 48
      %v53 = vadd.s32 %v46, 56
      %v54 = vadd.s32 %v46, 64
      %v55 = vadd.s32 %v46, 72
      %v56 = vadd.s32 %v46, 80
      %v57 = vadd.s32 %v46, 88
      %v58 = vadd.s32 %v46, 96
      %v59 = vadd.s32 %v46, 104
      %v60 = vadd.s32 %v46, 112
      %v61 = vadd.s32 %v46, 120
      %v62 = vlaneseq
      %v63 = vand.u32 %v62, 127
      %vm64 = vcmp.le.s32.totalorder %v46, %v63
      %vm65 = vcmp.le.s32.totalorder %v47, %v63
      %vm66 = vcmp.le.s32.totalorder %v48, %v63
      %vm67 = vcmp.le.s32.totalorder %v49, %v63
      %vm68 = vcmp.le.s32.totalorder %v50, %v63
      %vm69 = vcmp.le.s32.totalorder %v51, %v63
      %vm70 = vcmp.le.s32.totalorder %v52, %v63
      %vm71 = vcmp.le.s32.totalorder %v53, %v63
      %vm72 = vcmp.le.s32.totalorder %v54, %v63
      %vm73 = vcmp.le.s32.totalorder %v55, %v63
      %vm74 = vcmp.le.s32.totalorder %v56, %v63
      %vm75 = vcmp.le.s32.totalorder %v57, %v63
      %vm76 = vcmp.le.s32.totalorder %v58, %v63
      %vm77 = vcmp.le.s32.totalorder %v59, %v63
      %vm78 = vcmp.le.s32.totalorder %v60, %v63
      %vm79 = vcmp.le.s32.totalorder %v61, %v63
      %v80 = vsel %vm64, 1, 0
      %v81 = vsel %vm65, 1, 0
      %v82 = vsel %vm66, 1, 0
      %v83 = vsel %vm67, 1, 0
      %v84 = vsel %vm68, 1, 0
      %v85 = vsel %vm69, 1, 0
      %v86 = vsel %vm70, 1, 0
      %v87 = vsel %vm71, 1, 0
      %v88 = vsel %vm72, 1, 0
      %v89 = vsel %vm73, 1, 0
      %v90 = vsel %vm74, 1, 0
      %v91 = vsel %vm75, 1, 0
      %v92 = vsel %vm76, 1, 0
      %v93 = vsel %vm77, 1, 0
      %v94 = vsel %vm78, 1, 0
      %v95 = vsel %vm79, 1, 0
      %v96 = vcvt.s32.f32 %v80
      %v97 = vcvt.s32.f32 %v81
      %v98 = vcvt.s32.f32 %v82
      %v99 = vcvt.s32.f32 %v83
      %v100 = vcvt.s32.f32 %v84
      %v101 = vcvt.s32.f32 %v85
      %v102 = vcvt.s32.f32 %v86
      %v103 = vcvt.s32.f32 %v87
      %v104 = vcvt.s32.f32 %v88
      %v105 = vcvt.s32.f32 %v89
      %v106 = vcvt.s32.f32 %v90
      %v107 = vcvt.s32.f32 %v91
      %v108 = vcvt.s32.f32 %v92
      %v109 = vcvt.s32.f32 %v93
      %v110 = vcvt.s32.f32 %v94
      %v111 = vcvt.s32.f32 %v95
      %112 = vst [vmem:[#allocation5] sm:$0xff] %v96
      %113 = vst [vmem:[#allocation5 + $0x8] sm:$0xff] %v97
      %114 = vst [vmem:[#allocation5 + $0x10] sm:$0xff] %v98
      %115 = vst [vmem:[#allocation5 + $0x18] sm:$0xff] %v99
      %116 = vst [vmem:[#allocation5 + $0x20] sm:$0xff] %v100
      %117 = vst [vmem:[#allocation5 + $0x28] sm:$0xff] %v101
      %118 = vst [vmem:[#allocation5 + $0x30] sm:$0xff] %v102
      %119 = vst [vmem:[#allocation5 + $0x38] sm:$0xff] %v103
      %120 = vst [vmem:[#allocation5 + $0x40] sm:$0xff] %v104
      %121 = vst [vmem:[#allocation5 + $0x48] sm:$0xff] %v105
      %122 = vst [vmem:[#allocation5 + $0x50] sm:$0xff] %v106
      %123 = vst [vmem:[#allocation5 + $0x58] sm:$0xff] %v107
      %124 = vst [vmem:[#allocation5 + $0x60] sm:$0xff] %v108
      %125 = vst [vmem:[#allocation5 + $0x68] sm:$0xff] %v109
      %126 = vst [vmem:[#allocation5 + $0x70] sm:$0xff] %v110
      %127 = vst [vmem:[#allocation5 + $0x78] sm:$0xff] %v111
      %vm128 = vcmp.lt.s32.totalorder %v63, %v46
      %v129 = vsel %vm128, 1, 0
      %v130 = vcvt.s32.f32 %v129
      %vm131 = vcmask 64512
      %132 = vst.msk [vmem:[#allocation6] sm:$0xff] %vm131, %v130
    $region21: #{tpu_custom_call.1} parent=1 // pred_fallthru
      _
    %v133 = vld [vmem:[#allocation7] sm:$0xff]
    %v134 = vld [vmem:[#allocation10] sm:$0xff]
    %v135 = vld [vmem:[#allocation2] sm:$0x1]
    %v136 = vld [vmem:[#allocation3] sm:$0x1]
    %137 = vmax.xlane.f32.xlu0 %v133
    %v138 = vpop.xlane.xlu0 %137
    %v139 = vrot.slane %v138, 4
    %v140 = vmax.f32 %v138, %v139
    %v141 = vrot.slane %v140, 2
    %v142 = vmax.f32 %v140, %v141
    %v143 = vrot.slane %v142, 1
    %v144 = vmax.f32 %v142, %v143
    %s145 = vtos %v144
    %v146 = vstv %s145
    %v147 = vmax.f32 %v135, %v146
    %v149 = vlaneseq
    %v150 = vshrl.u32 %v149, 7
    %v151 = vsub.s32 0, %v150
    %v152 = vrot.slane %v147, %v151
    %153 = vset.pattern.permute.xlu0 0
    %154 = vperm.xlu0 %153, %v152
    %v155 = vpop.permute.xlu0 %154
    %v157 = vsub.f32 %v133, %v155
    %v158 = vmul.f32 %v157, 1.442695
    %v159 = vpow.pop %v158
    %v160 = vld [vmem:[#allocation5] sm:$0xff]
    %v161 = vld [vmem:[#allocation5 + $0x8] sm:$0xff]
    %v162 = vld [vmem:[#allocation5 + $0x10] sm:$0xff]
    %v163 = vld [vmem:[#allocation5 + $0x18] sm:$0xff]
    %v164 = vld [vmem:[#allocation5 + $0x20] sm:$0xff]
    %v165 = vld [vmem:[#allocation5 + $0x28] sm:$0xff]
    %v166 = vld [vmem:[#allocation5 + $0x30] sm:$0xff]
    %v167 = vld [vmem:[#allocation5 + $0x38] sm:$0xff]
    %v168 = vld [vmem:[#allocation5 + $0x40] sm:$0xff]
    %v169 = vld [vmem:[#allocation5 + $0x48] sm:$0xff]
    %v170 = vld [vmem:[#allocation5 + $0x50] sm:$0xff]
    %v171 = vld [vmem:[#allocation5 + $0x58] sm:$0xff]
    %v172 = vld [vmem:[#allocation5 + $0x60] sm:$0xff]
    %v173 = vld [vmem:[#allocation5 + $0x68] sm:$0xff]
    %v174 = vld [vmem:[#allocation5 + $0x70] sm:$0xff]
    %v175 = vld [vmem:[#allocation5 + $0x78] sm:$0xff]
    %176 = vmatprep.subr.mxu0 0.0
    %v177 = vand.u32 %v175, 4294901760
    %178 = vmatpush1.msra.mxu0 %v177
    %179 = vmatprep.subr.mxu0 0.0
    %v180 = vand.u32 %v174, 4294901760
    %181 = vmatpush1.msra.mxu0 %v180
    %182 = vmatprep.subr.mxu0 0.0
    %v183 = vand.u32 %v173, 4294901760
    %184 = vmatpush1.msra.mxu0 %v183
    %185 = vmatprep.subr.mxu0 0.0
    %v186 = vand.u32 %v172, 4294901760
    %187 = vmatpush1.msra.mxu0 %v186
    %188 = vmatprep.subr.mxu0 0.0
    %v189 = vand.u32 %v171, 4294901760
    %190 = vmatpush1.msra.mxu0 %v189
    %191 = vmatprep.subr.mxu0 0.0
    %v192 = vand.u32 %v170, 4294901760
    %193 = vmatpush1.msra.mxu0 %v192
    %194 = vmatprep.subr.mxu0 0.0
    %v195 = vand.u32 %v169, 4294901760
    %196 = vmatpush1.msra.mxu0 %v195
    %197 = vmatprep.subr.mxu0 0.0
    %v198 = vand.u32 %v168, 4294901760
    %199 = vmatpush1.msra.mxu0 %v198
    %200 = vmatprep.subr.mxu0 0.0
    %v201 = vand.u32 %v167, 4294901760
    %202 = vmatpush1.msra.mxu0 %v201
    %203 = vmatprep.subr.mxu0 0.0
    %v204 = vand.u32 %v166, 4294901760
    %205 = vmatpush1.msra.mxu0 %v204
    %206 = vmatprep.subr.mxu0 0.0
    %v207 = vand.u32 %v165, 4294901760
    %208 = vmatpush1.msra.mxu0 %v207
    %209 = vmatprep.subr.mxu0 0.0
    %v210 = vand.u32 %v164, 4294901760
    %211 = vmatpush1.msra.mxu0 %v210
    %212 = vmatprep.subr.mxu0 0.0
    %v213 = vand.u32 %v163, 4294901760
    %214 = vmatpush1.msra.mxu0 %v213
    %215 = vmatprep.subr.mxu0 0.0
    %v216 = vand.u32 %v162, 4294901760
    %217 = vmatpush1.msra.mxu0 %v216
    %218 = vmatprep.subr.mxu0 0.0
    %v219 = vand.u32 %v161, 4294901760
    %220 = vmatpush1.msra.mxu0 %v219
    %221 = vmatprep.subr.mxu0 0.0
    %v222 = vand.u32 %v160, 4294901760
    %223 = vmatpush1.msra.mxu0 %v222
    %224 = vmatprep.subr.mxu0 0.0
    %225 = vmatpush2.msra.mxu0 0.0
    %226 = vmatprep.subr.mxu0 0.0
    %227 = vmatpush2.msra.mxu0 0.0
    %228 = vmatprep.subr.mxu0 0.0
    %229 = vmatpush2.msra.mxu0 0.0
    %230 = vmatprep.subr.mxu0 0.0
    %231 = vmatpush2.msra.mxu0 0.0
    %232 = vmatprep.subr.mxu0 0.0
    %233 = vmatpush2.msra.mxu0 0.0
    %234 = vmatprep.subr.mxu0 0.0
    %235 = vmatpush2.msra.mxu0 0.0
    %236 = vmatprep.subr.mxu0 0.0
    %237 = vmatpush2.msra.mxu0 0.0
    %238 = vmatprep.subr.mxu0 0.0
    %239 = vmatpush2.msra.mxu0 0.0
    %240 = vmatprep.subr.mxu0 0.0
    %241 = vmatpush2.msra.mxu0 0.0
    %242 = vmatprep.subr.mxu0 0.0
    %243 = vmatpush2.msra.mxu0 0.0
    %244 = vmatprep.subr.mxu0 0.0
    %245 = vmatpush2.msra.mxu0 0.0
    %246 = vmatprep.subr.mxu0 0.0
    %247 = vmatpush2.msra.mxu0 0.0
    %248 = vmatprep.subr.mxu0 0.0
    %249 = vmatpush2.msra.mxu0 0.0
    %250 = vmatprep.subr.mxu0 0.0
    %251 = vmatpush2.msra.mxu0 0.0
    %252 = vmatprep.subr.mxu0 0.0
    %253 = vmatpush2.msra.mxu0 0.0
    %254 = vmatprep.subr.mxu0 0.0
    %255 = vmatpush2.msra.mxu0 0.0
    %256 = vmatprep.mubr.f32.mxu0 0.0
    %v257 = vand.u32 %v159, 4294901760
    %v258 = vsub.f32 %v159, %v257
    %v259 = vand.u32 %v258, 4294901760
    %v260 = vsub.f32 %v258, %v259
    %v261 = vand.u32 %v260, 4294901760
    %262 = vmatmul.mubr.f32.gmra.mxu0 %v261
    %v263 = vpop.f32.mrf.mxu0
    %v264 = vadd.f32 0.0, %v263
    %v265 = vpop.f32.mrf.mxu0
    %266 = vdwg.mxu0
    %267 = vmatprep.subr.mxu0 0.0
    %v268 = vand.u32 %v175, 4294901760
    %v269 = vsub.f32 %v175, %v268
    %v270 = vand.u32 %v269, 4294901760
    %v271 = vsub.f32 %v269, %v270
    %v272 = vand.u32 %v271, 4294901760
    %273 = vmatpush1.msra.mxu0 %v272
    %274 = vmatprep.subr.mxu0 0.0
    %v275 = vand.u32 %v174, 4294901760
    %v276 = vsub.f32 %v174, %v275
    %v277 = vand.u32 %v276, 4294901760
    %v278 = vsub.f32 %v276, %v277
    %v279 = vand.u32 %v278, 4294901760
    %280 = vmatpush1.msra.mxu0 %v279
    %281 = vmatprep.subr.mxu0 0.0
    %v282 = vand.u32 %v173, 4294901760
    %v283 = vsub.f32 %v173, %v282
    %v284 = vand.u32 %v283, 4294901760
    %v285 = vsub.f32 %v283, %v284
    %v286 = vand.u32 %v285, 4294901760
    %287 = vmatpush1.msra.mxu0 %v286
    %288 = vmatprep.subr.mxu0 0.0
    %v289 = vand.u32 %v172, 4294901760
    %v290 = vsub.f32 %v172, %v289
    %v291 = vand.u32 %v290, 4294901760
    %v292 = vsub.f32 %v290, %v291
    %v293 = vand.u32 %v292, 4294901760
    %294 = vmatpush1.msra.mxu0 %v293
    %295 = vmatprep.subr.mxu0 0.0
    %v296 = vand.u32 %v171, 4294901760
    %v297 = vsub.f32 %v171, %v296
    %v298 = vand.u32 %v297, 4294901760
    %v299 = vsub.f32 %v297, %v298
    %v300 = vand.u32 %v299, 4294901760
    %301 = vmatpush1.msra.mxu0 %v300
    %302 = vmatprep.subr.mxu0 0.0
    %v303 = vand.u32 %v170, 4294901760
    %v304 = vsub.f32 %v170, %v303
    %v305 = vand.u32 %v304, 4294901760
    %v306 = vsub.f32 %v304, %v305
    %v307 = vand.u32 %v306, 4294901760
    %308 = vmatpush1.msra.mxu0 %v307
    %309 = vmatprep.subr.mxu0 0.0
    %v310 = vand.u32 %v169, 4294901760
    %v311 = vsub.f32 %v169, %v310
    %v312 = vand.u32 %v311, 4294901760
    %v313 = vsub.f32 %v311, %v312
    %v314 = vand.u32 %v313, 4294901760
    %315 = vmatpush1.msra.mxu0 %v314
    %316 = vmatprep.subr.mxu0 0.0
    %v317 = vand.u32 %v168, 4294901760
    %v318 = vsub.f32 %v168, %v317
    %v319 = vand.u32 %v318, 4294901760
    %v320 = vsub.f32 %v318, %v319
    %v321 = vand.u32 %v320, 4294901760
    %322 = vmatpush1.msra.mxu0 %v321
    %323 = vmatprep.subr.mxu0 0.0
    %v324 = vand.u32 %v167, 4294901760
    %v325 = vsub.f32 %v167, %v324
    %v326 = vand.u32 %v325, 4294901760
    %v327 = vsub.f32 %v325, %v326
    %v328 = vand.u32 %v327, 4294901760
    %329 = vmatpush1.msra.mxu0 %v328
    %330 = vmatprep.subr.mxu0 0.0
    %v331 = vand.u32 %v166, 4294901760
    %v332 = vsub.f32 %v166, %v331
    %v333 = vand.u32 %v332, 4294901760
    %v334 = vsub.f32 %v332, %v333
    %v335 = vand.u32 %v334, 4294901760
    %336 = vmatpush1.msra.mxu0 %v335
    %337 = vmatprep.subr.mxu0 0.0
    %v338 = vand.u32 %v165, 4294901760
    %v339 = vsub.f32 %v165, %v338
    %v340 = vand.u32 %v339, 4294901760
    %v341 = vsub.f32 %v339, %v340
    %v342 = vand.u32 %v341, 4294901760
    %343 = vmatpush1.msra.mxu0 %v342
    %344 = vmatprep.subr.mxu0 0.0
    %v345 = vand.u32 %v164, 4294901760
    %v346 = vsub.f32 %v164, %v345
    %v347 = vand.u32 %v346, 4294901760
    %v348 = vsub.f32 %v346, %v347
    %v349 = vand.u32 %v348, 4294901760
    %350 = vmatpush1.msra.mxu0 %v349
    %351 = vmatprep.subr.mxu0 0.0
    %v352 = vand.u32 %v163, 4294901760
    %v353 = vsub.f32 %v163, %v352
    %v354 = vand.u32 %v353, 4294901760
    %v355 = vsub.f32 %v353, %v354
    %v356 = vand.u32 %v355, 4294901760
    %357 = vmatpush1.msra.mxu0 %v356
    %358 = vmatprep.subr.mxu0 0.0
    %v359 = vand.u32 %v162, 4294901760
    %v360 = vsub.f32 %v162, %v359
    %v361 = vand.u32 %v360, 4294901760
    %v362 = vsub.f32 %v360, %v361
    %v363 = vand.u32 %v362, 4294901760
    %364 = vmatpush1.msra.mxu0 %v363
    %365 = vmatprep.subr.mxu0 0.0
    %v366 = vand.u32 %v161, 4294901760
    %v367 = vsub.f32 %v161, %v366
    %v368 = vand.u32 %v367, 4294901760
    %v369 = vsub.f32 %v367, %v368
    %v370 = vand.u32 %v369, 4294901760
    %371 = vmatpush1.msra.mxu0 %v370
    %372 = vmatprep.subr.mxu0 0.0
    %v373 = vand.u32 %v160, 4294901760
    %v374 = vsub.f32 %v160, %v373
    %v375 = vand.u32 %v374, 4294901760
    %v376 = vsub.f32 %v374, %v375
    %v377 = vand.u32 %v376, 4294901760
    %378 = vmatpush1.msra.mxu0 %v377
    %379 = vmatprep.subr.mxu0 0.0
    %380 = vmatpush2.msra.mxu0 0.0
    %381 = vmatprep.subr.mxu0 0.0
    %382 = vmatpush2.msra.mxu0 0.0
    %383 = vmatprep.subr.mxu0 0.0
    %384 = vmatpush2.msra.mxu0 0.0
    %385 = vmatprep.subr.mxu0 0.0
    %386 = vmatpush2.msra.mxu0 0.0
    %387 = vmatprep.subr.mxu0 0.0
    %388 = vmatpush2.msra.mxu0 0.0
    %389 = vmatprep.subr.mxu0 0.0
    %390 = vmatpush2.msra.mxu0 0.0
    %391 = vmatprep.subr.mxu0 0.0
    %392 = vmatpush2.msra.mxu0 0.0
    %393 = vmatprep.subr.mxu0 0.0
    %394 = vmatpush2.msra.mxu0 0.0
    %395 = vmatprep.subr.mxu0 0.0
    %396 = vmatpush2.msra.mxu0 0.0
    %397 = vmatprep.subr.mxu0 0.0
    %398 = vmatpush2.msra.mxu0 0.0
    %399 = vmatprep.subr.mxu0 0.0
    %400 = vmatpush2.msra.mxu0 0.0
    %401 = vmatprep.subr.mxu0 0.0
    %402 = vmatpush2.msra.mxu0 0.0
    %403 = vmatprep.subr.mxu0 0.0
    %404 = vmatpush2.msra.mxu0 0.0
    %405 = vmatprep.subr.mxu0 0.0
    %406 = vmatpush2.msra.mxu0 0.0
    %407 = vmatprep.subr.mxu0 0.0
    %408 = vmatpush2.msra.mxu0 0.0
    %409 = vmatprep.subr.mxu0 0.0
    %410 = vmatpush2.msra.mxu0 0.0
    %411 = vmatprep.mubr.f32.mxu0 0.0
    %v412 = vand.u32 %v159, 4294901760
    %413 = vmatmul.mubr.f32.gmra.mxu0 %v412
    %v414 = vpop.f32.mrf.mxu0
    %v415 = vadd.f32 %v264, %v414
    %v416 = vpop.f32.mrf.mxu0
    %417 = vdwg.mxu0
    %418 = vmatprep.subr.mxu0 0.0
    %v419 = vand.u32 %v175, 4294901760
    %v420 = vsub.f32 %v175, %v419
    %421 = vmatpush1.msra.mxu0 %v420
    %422 = vmatprep.subr.mxu0 0.0
    %v423 = vand.u32 %v174, 4294901760
    %v424 = vsub.f32 %v174, %v423
    %425 = vmatpush1.msra.mxu0 %v424
    %426 = vmatprep.subr.mxu0 0.0
    %v427 = vand.u32 %v173, 4294901760
    %v428 = vsub.f32 %v173, %v427
    %429 = vmatpush1.msra.mxu0 %v428
    %430 = vmatprep.subr.mxu0 0.0
    %v431 = vand.u32 %v172, 4294901760
    %v432 = vsub.f32 %v172, %v431
    %433 = vmatpush1.msra.mxu0 %v432
    %434 = vmatprep.subr.mxu0 0.0
    %v435 = vand.u32 %v171, 4294901760
    %v436 = vsub.f32 %v171, %v435
    %437 = vmatpush1.msra.mxu0 %v436
    %438 = vmatprep.subr.mxu0 0.0
    %v439 = vand.u32 %v170, 4294901760
    %v440 = vsub.f32 %v170, %v439
    %441 = vmatpush1.msra.mxu0 %v440
    %442 = vmatprep.subr.mxu0 0.0
    %v443 = vand.u32 %v169, 4294901760
    %v444 = vsub.f32 %v169, %v443
    %445 = vmatpush1.msra.mxu0 %v444
    %446 = vmatprep.subr.mxu0 0.0
    %v447 = vand.u32 %v168, 4294901760
    %v448 = vsub.f32 %v168, %v447
    %449 = vmatpush1.msra.mxu0 %v448
    %450 = vmatprep.subr.mxu0 0.0
    %v451 = vand.u32 %v167, 4294901760
    %v452 = vsub.f32 %v167, %v451
    %453 = vmatpush1.msra.mxu0 %v452
    %454 = vmatprep.subr.mxu0 0.0
    %v455 = vand.u32 %v166, 4294901760
    %v456 = vsub.f32 %v166, %v455
    %457 = vmatpush1.msra.mxu0 %v456
    %458 = vmatprep.subr.mxu0 0.0
    %v459 = vand.u32 %v165, 4294901760
    %v460 = vsub.f32 %v165, %v459
    %461 = vmatpush1.msra.mxu0 %v460
    %462 = vmatprep.subr.mxu0 0.0
    %v463 = vand.u32 %v164, 4294901760
    %v464 = vsub.f32 %v164, %v463
    %465 = vmatpush1.msra.mxu0 %v464
    %466 = vmatprep.subr.mxu0 0.0
    %v467 = vand.u32 %v163, 4294901760
    %v468 = vsub.f32 %v163, %v467
    %469 = vmatpush1.msra.mxu0 %v468
    %470 = vmatprep.subr.mxu0 0.0
    %v471 = vand.u32 %v162, 4294901760
    %v472 = vsub.f32 %v162, %v471
    %473 = vmatpush1.msra.mxu0 %v472
    %474 = vmatprep.subr.mxu0 0.0
    %v475 = vand.u32 %v161, 4294901760
    %v476 = vsub.f32 %v161, %v475
    %477 = vmatpush1.msra.mxu0 %v476
    %478 = vmatprep.subr.mxu0 0.0
    %v479 = vand.u32 %v160, 4294901760
    %v480 = vsub.f32 %v160, %v479
    %481 = vmatpush1.msra.mxu0 %v480
    %482 = vmatprep.subr.mxu0 0.0
    %483 = vmatpush2.msra.mxu0 0.0
    %484 = vmatprep.subr.mxu0 0.0
    %485 = vmatpush2.msra.mxu0 0.0
    %486 = vmatprep.subr.mxu0 0.0
    %487 = vmatpush2.msra.mxu0 0.0
    %488 = vmatprep.subr.mxu0 0.0
    %489 = vmatpush2.msra.mxu0 0.0
    %490 = vmatprep.subr.mxu0 0.0
    %491 = vmatpush2.msra.mxu0 0.0
    %492 = vmatprep.subr.mxu0 0.0
    %493 = vmatpush2.msra.mxu0 0.0
    %494 = vmatprep.subr.mxu0 0.0
    %495 = vmatpush2.msra.mxu0 0.0
    %496 = vmatprep.subr.mxu0 0.0
    %497 = vmatpush2.msra.mxu0 0.0
    %498 = vmatprep.subr.mxu0 0.0
    %499 = vmatpush2.msra.mxu0 0.0
    %500 = vmatprep.subr.mxu0 0.0
    %501 = vmatpush2.msra.mxu0 0.0
    %502 = vmatprep.subr.mxu0 0.0
    %503 = vmatpush2.msra.mxu0 0.0
    %504 = vmatprep.subr.mxu0 0.0
    %505 = vmatpush2.msra.mxu0 0.0
    %506 = vmatprep.subr.mxu0 0.0
    %507 = vmatpush2.msra.mxu0 0.0
    %508 = vmatprep.subr.mxu0 0.0
    %509 = vmatpush2.msra.mxu0 0.0
    %510 = vmatprep.subr.mxu0 0.0
    %511 = vmatpush2.msra.mxu0 0.0
    %512 = vmatprep.subr.mxu0 0.0
    %513 = vmatpush2.msra.mxu0 0.0
    %514 = vmatprep.mubr.f32.mxu0 0.0
    %v515 = vand.u32 %v159, 4294901760
    %v516 = vsub.f32 %v159, %v515
    %517 = vmatmul.mubr.f32.gmra.mxu0 %v516
    %v518 = vpop.f32.mrf.mxu0
    %v519 = vadd.f32 %v415, %v518
    %v520 = vpop.f32.mrf.mxu0
    %521 = vdwg.mxu0
    %522 = vmatprep.subr.mxu0 0.0
    %v523 = vand.u32 %v175, 4294901760
    %524 = vmatpush1.msra.mxu0 %v523
    %525 = vmatprep.subr.mxu0 0.0
    %v526 = vand.u32 %v174, 4294901760
    %527 = vmatpush1.msra.mxu0 %v526
    %528 = vmatprep.subr.mxu0 0.0
    %v529 = vand.u32 %v173, 4294901760
    %530 = vmatpush1.msra.mxu0 %v529
    %531 = vmatprep.subr.mxu0 0.0
    %v532 = vand.u32 %v172, 4294901760
    %533 = vmatpush1.msra.mxu0 %v532
    %534 = vmatprep.subr.mxu0 0.0
    %v535 = vand.u32 %v171, 4294901760
    %536 = vmatpush1.msra.mxu0 %v535
    %537 = vmatprep.subr.mxu0 0.0
    %v538 = vand.u32 %v170, 4294901760
    %539 = vmatpush1.msra.mxu0 %v538
    %540 = vmatprep.subr.mxu0 0.0
    %v541 = vand.u32 %v169, 4294901760
    %542 = vmatpush1.msra.mxu0 %v541
    %543 = vmatprep.subr.mxu0 0.0
    %v544 = vand.u32 %v168, 4294901760
    %545 = vmatpush1.msra.mxu0 %v544
    %546 = vmatprep.subr.mxu0 0.0
    %v547 = vand.u32 %v167, 4294901760
    %548 = vmatpush1.msra.mxu0 %v547
    %549 = vmatprep.subr.mxu0 0.0
    %v550 = vand.u32 %v166, 4294901760
    %551 = vmatpush1.msra.mxu0 %v550
    %552 = vmatprep.subr.mxu0 0.0
    %v553 = vand.u32 %v165, 4294901760
    %554 = vmatpush1.msra.mxu0 %v553
    %555 = vmatprep.subr.mxu0 0.0
    %v556 = vand.u32 %v164, 4294901760
    %557 = vmatpush1.msra.mxu0 %v556
    %558 = vmatprep.subr.mxu0 0.0
    %v559 = vand.u32 %v163, 4294901760
    %560 = vmatpush1.msra.mxu0 %v559
    %561 = vmatprep.subr.mxu0 0.0
    %v562 = vand.u32 %v162, 4294901760
    %563 = vmatpush1.msra.mxu0 %v562
    %564 = vmatprep.subr.mxu0 0.0
    %v565 = vand.u32 %v161, 4294901760
    %566 = vmatpush1.msra.mxu0 %v565
    %567 = vmatprep.subr.mxu0 0.0
    %v568 = vand.u32 %v160, 4294901760
    %569 = vmatpush1.msra.mxu0 %v568
    %570 = vmatprep.subr.mxu0 0.0
    %571 = vmatpush2.msra.mxu0 0.0
    %572 = vmatprep.subr.mxu0 0.0
    %573 = vmatpush2.msra.mxu0 0.0
    %574 = vmatprep.subr.mxu0 0.0
    %575 = vmatpush2.msra.mxu0 0.0
    %576 = vmatprep.subr.mxu0 0.0
    %577 = vmatpush2.msra.mxu0 0.0
    %578 = vmatprep.subr.mxu0 0.0
    %579 = vmatpush2.msra.mxu0 0.0
    %580 = vmatprep.subr.mxu0 0.0
    %581 = vmatpush2.msra.mxu0 0.0
    %582 = vmatprep.subr.mxu0 0.0
    %583 = vmatpush2.msra.mxu0 0.0
    %584 = vmatprep.subr.mxu0 0.0
    %585 = vmatpush2.msra.mxu0 0.0
    %586 = vmatprep.subr.mxu0 0.0
    %587 = vmatpush2.msra.mxu0 0.0
    %588 = vmatprep.subr.mxu0 0.0
    %589 = vmatpush2.msra.mxu0 0.0
    %590 = vmatprep.subr.mxu0 0.0
    %591 = vmatpush2.msra.mxu0 0.0
    %592 = vmatprep.subr.mxu0 0.0
    %593 = vmatpush2.msra.mxu0 0.0
    %594 = vmatprep.subr.mxu0 0.0
    %595 = vmatpush2.msra.mxu0 0.0
    %596 = vmatprep.subr.mxu0 0.0
    %597 = vmatpush2.msra.mxu0 0.0
    %598 = vmatprep.subr.mxu0 0.0
    %599 = vmatpush2.msra.mxu0 0.0
    %600 = vmatprep.subr.mxu0 0.0
    %601 = vmatpush2.msra.mxu0 0.0
    %602 = vmatprep.mubr.f32.mxu0 0.0
    %v603 = vand.u32 %v159, 4294901760
    %v604 = vsub.f32 %v159, %v603
    %v605 = vand.u32 %v604, 4294901760
    %606 = vmatmul.mubr.f32.gmra.mxu0 %v605
    %v607 = vpop.f32.mrf.mxu0
    %v608 = vadd.f32 %v519, %v607
    %v609 = vpop.f32.mrf.mxu0
    %610 = vdwg.mxu0
    %611 = vmatprep.subr.mxu0 0.0
    %v612 = vand.u32 %v175, 4294901760
    %v613 = vsub.f32 %v175, %v612
    %v614 = vand.u32 %v613, 4294901760
    %615 = vmatpush1.msra.mxu0 %v614
    %616 = vmatprep.subr.mxu0 0.0
    %v617 = vand.u32 %v174, 4294901760
    %v618 = vsub.f32 %v174, %v617
    %v619 = vand.u32 %v618, 4294901760
    %620 = vmatpush1.msra.mxu0 %v619
    %621 = vmatprep.subr.mxu0 0.0
    %v622 = vand.u32 %v173, 4294901760
    %v623 = vsub.f32 %v173, %v622
    %v624 = vand.u32 %v623, 4294901760
    %625 = vmatpush1.msra.mxu0 %v624
    %626 = vmatprep.subr.mxu0 0.0
    %v627 = vand.u32 %v172, 4294901760
    %v628 = vsub.f32 %v172, %v627
    %v629 = vand.u32 %v628, 4294901760
    %630 = vmatpush1.msra.mxu0 %v629
    %631 = vmatprep.subr.mxu0 0.0
    %v632 = vand.u32 %v171, 4294901760
    %v633 = vsub.f32 %v171, %v632
    %v634 = vand.u32 %v633, 4294901760
    %635 = vmatpush1.msra.mxu0 %v634
    %636 = vmatprep.subr.mxu0 0.0
    %v637 = vand.u32 %v170, 4294901760
    %v638 = vsub.f32 %v170, %v637
    %v639 = vand.u32 %v638, 4294901760
    %640 = vmatpush1.msra.mxu0 %v639
    %641 = vmatprep.subr.mxu0 0.0
    %v642 = vand.u32 %v169, 4294901760
    %v643 = vsub.f32 %v169, %v642
    %v644 = vand.u32 %v643, 4294901760
    %645 = vmatpush1.msra.mxu0 %v644
    %646 = vmatprep.subr.mxu0 0.0
    %v647 = vand.u32 %v168, 4294901760
    %v648 = vsub.f32 %v168, %v647
    %v649 = vand.u32 %v648, 4294901760
    %650 = vmatpush1.msra.mxu0 %v649
    %651 = vmatprep.subr.mxu0 0.0
    %v652 = vand.u32 %v167, 4294901760
    %v653 = vsub.f32 %v167, %v652
    %v654 = vand.u32 %v653, 4294901760
    %655 = vmatpush1.msra.mxu0 %v654
    %656 = vmatprep.subr.mxu0 0.0
    %v657 = vand.u32 %v166, 4294901760
    %v658 = vsub.f32 %v166, %v657
    %v659 = vand.u32 %v658, 4294901760
    %660 = vmatpush1.msra.mxu0 %v659
    %661 = vmatprep.subr.mxu0 0.0
    %v662 = vand.u32 %v165, 4294901760
    %v663 = vsub.f32 %v165, %v662
    %v664 = vand.u32 %v663, 4294901760
    %665 = vmatpush1.msra.mxu0 %v664
    %666 = vmatprep.subr.mxu0 0.0
    %v667 = vand.u32 %v164, 4294901760
    %v668 = vsub.f32 %v164, %v667
    %v669 = vand.u32 %v668, 4294901760
    %670 = vmatpush1.msra.mxu0 %v669
    %671 = vmatprep.subr.mxu0 0.0
    %v672 = vand.u32 %v163, 4294901760
    %v673 = vsub.f32 %v163, %v672
    %v674 = vand.u32 %v673, 4294901760
    %675 = vmatpush1.msra.mxu0 %v674
    %676 = vmatprep.subr.mxu0 0.0
    %v677 = vand.u32 %v162, 4294901760
    %v678 = vsub.f32 %v162, %v677
    %v679 = vand.u32 %v678, 4294901760
    %680 = vmatpush1.msra.mxu0 %v679
    %681 = vmatprep.subr.mxu0 0.0
    %v682 = vand.u32 %v161, 4294901760
    %v683 = vsub.f32 %v161, %v682
    %v684 = vand.u32 %v683, 4294901760
    %685 = vmatpush1.msra.mxu0 %v684
    %686 = vmatprep.subr.mxu0 0.0
    %v687 = vand.u32 %v160, 4294901760
    %v688 = vsub.f32 %v160, %v687
    %v689 = vand.u32 %v688, 4294901760
    %690 = vmatpush1.msra.mxu0 %v689
    %691 = vmatprep.subr.mxu0 0.0
    %692 = vmatpush2.msra.mxu0 0.0
    %693 = vmatprep.subr.mxu0 0.0
    %694 = vmatpush2.msra.mxu0 0.0
    %695 = vmatprep.subr.mxu0 0.0
    %696 = vmatpush2.msra.mxu0 0.0
    %697 = vmatprep.subr.mxu0 0.0
    %698 = vmatpush2.msra.mxu0 0.0
    %699 = vmatprep.subr.mxu0 0.0
    %700 = vmatpush2.msra.mxu0 0.0
    %701 = vmatprep.subr.mxu0 0.0
    %702 = vmatpush2.msra.mxu0 0.0
    %703 = vmatprep.subr.mxu0 0.0
    %704 = vmatpush2.msra.mxu0 0.0
    %705 = vmatprep.subr.mxu0 0.0
    %706 = vmatpush2.msra.mxu0 0.0
    %707 = vmatprep.subr.mxu0 0.0
    %708 = vmatpush2.msra.mxu0 0.0
    %709 = vmatprep.subr.mxu0 0.0
    %710 = vmatpush2.msra.mxu0 0.0
    %711 = vmatprep.subr.mxu0 0.0
    %712 = vmatpush2.msra.mxu0 0.0
    %713 = vmatprep.subr.mxu0 0.0
    %714 = vmatpush2.msra.mxu0 0.0
    %715 = vmatprep.subr.mxu0 0.0
    %716 = vmatpush2.msra.mxu0 0.0
    %717 = vmatprep.subr.mxu0 0.0
    %718 = vmatpush2.msra.mxu0 0.0
    %719 = vmatprep.subr.mxu0 0.0
    %720 = vmatpush2.msra.mxu0 0.0
    %721 = vmatprep.subr.mxu0 0.0
    %722 = vmatpush2.msra.mxu0 0.0
    %723 = vmatprep.mubr.f32.mxu0 0.0
    %v724 = vand.u32 %v159, 4294901760
    %725 = vmatmul.mubr.f32.gmra.mxu0 %v724
    %v726 = vpop.f32.mrf.mxu0
    %v727 = vadd.f32 %v608, %v726
    %v728 = vpop.f32.mrf.mxu0
    %729 = vdwg.mxu0
    %730 = vmatprep.subr.mxu0 0.0
    %v731 = vand.u32 %v175, 4294901760
    %732 = vmatpush1.msra.mxu0 %v731
    %733 = vmatprep.subr.mxu0 0.0
    %v734 = vand.u32 %v174, 4294901760
    %735 = vmatpush1.msra.mxu0 %v734
    %736 = vmatprep.subr.mxu0 0.0
    %v737 = vand.u32 %v173, 4294901760
    %738 = vmatpush1.msra.mxu0 %v737
    %739 = vmatprep.subr.mxu0 0.0
    %v740 = vand.u32 %v172, 4294901760
    %741 = vmatpush1.msra.mxu0 %v740
    %742 = vmatprep.subr.mxu0 0.0
    %v743 = vand.u32 %v171, 4294901760
    %744 = vmatpush1.msra.mxu0 %v743
    %745 = vmatprep.subr.mxu0 0.0
    %v746 = vand.u32 %v170, 4294901760
    %747 = vmatpush1.msra.mxu0 %v746
    %748 = vmatprep.subr.mxu0 0.0
    %v749 = vand.u32 %v169, 4294901760
    %750 = vmatpush1.msra.mxu0 %v749
    %751 = vmatprep.subr.mxu0 0.0
    %v752 = vand.u32 %v168, 4294901760
    %753 = vmatpush1.msra.mxu0 %v752
    %754 = vmatprep.subr.mxu0 0.0
    %v755 = vand.u32 %v167, 4294901760
    %756 = vmatpush1.msra.mxu0 %v755
    %757 = vmatprep.subr.mxu0 0.0
    %v758 = vand.u32 %v166, 4294901760
    %759 = vmatpush1.msra.mxu0 %v758
    %760 = vmatprep.subr.mxu0 0.0
    %v761 = vand.u32 %v165, 4294901760
    %762 = vmatpush1.msra.mxu0 %v761
    %763 = vmatprep.subr.mxu0 0.0
    %v764 = vand.u32 %v164, 4294901760
    %765 = vmatpush1.msra.mxu0 %v764
    %766 = vmatprep.subr.mxu0 0.0
    %v767 = vand.u32 %v163, 4294901760
    %768 = vmatpush1.msra.mxu0 %v767
    %769 = vmatprep.subr.mxu0 0.0
    %v770 = vand.u32 %v162, 4294901760
    %771 = vmatpush1.msra.mxu0 %v770
    %772 = vmatprep.subr.mxu0 0.0
    %v773 = vand.u32 %v161, 4294901760
    %774 = vmatpush1.msra.mxu0 %v773
    %775 = vmatprep.subr.mxu0 0.0
    %v776 = vand.u32 %v160, 4294901760
    %777 = vmatpush1.msra.mxu0 %v776
    %778 = vmatprep.subr.mxu0 0.0
    %779 = vmatpush2.msra.mxu0 0.0
    %780 = vmatprep.subr.mxu0 0.0
    %781 = vmatpush2.msra.mxu0 0.0
    %782 = vmatprep.subr.mxu0 0.0
    %783 = vmatpush2.msra.mxu0 0.0
    %784 = vmatprep.subr.mxu0 0.0
    %785 = vmatpush2.msra.mxu0 0.0
    %786 = vmatprep.subr.mxu0 0.0
    %787 = vmatpush2.msra.mxu0 0.0
    %788 = vmatprep.subr.mxu0 0.0
    %789 = vmatpush2.msra.mxu0 0.0
    %790 = vmatprep.subr.mxu0 0.0
    %791 = vmatpush2.msra.mxu0 0.0
    %792 = vmatprep.subr.mxu0 0.0
    %793 = vmatpush2.msra.mxu0 0.0
    %794 = vmatprep.subr.mxu0 0.0
    %795 = vmatpush2.msra.mxu0 0.0
    %796 = vmatprep.subr.mxu0 0.0
    %797 = vmatpush2.msra.mxu0 0.0
    %798 = vmatprep.subr.mxu0 0.0
    %799 = vmatpush2.msra.mxu0 0.0
    %800 = vmatprep.subr.mxu0 0.0
    %801 = vmatpush2.msra.mxu0 0.0
    %802 = vmatprep.subr.mxu0 0.0
    %803 = vmatpush2.msra.mxu0 0.0
    %804 = vmatprep.subr.mxu0 0.0
    %805 = vmatpush2.msra.mxu0 0.0
    %806 = vmatprep.subr.mxu0 0.0
    %807 = vmatpush2.msra.mxu0 0.0
    %808 = vmatprep.subr.mxu0 0.0
    %809 = vmatpush2.msra.mxu0 0.0
    %810 = vmatprep.mubr.f32.mxu0 0.0
    %v811 = vand.u32 %v159, 4294901760
    %812 = vmatmul.mubr.f32.gmra.mxu0 %v811
    %v813 = vpop.f32.mrf.mxu0
    %v814 = vadd.f32 %v727, %v813
    %v815 = vpop.f32.mrf.mxu0
    %816 = vdwg.mxu0
    %818 = vset.pattern.permute.xlu0 127
    %819 = vperm.xlu0 %818, %v814
    %v820 = vpop.permute.xlu0 %819
    %v822 = vld [vmem:[#allocation6] sm:$0xff]
    %vm823 = vcmask 64512
    %v825 = vsel %vm823, %v822, 0
    %827 = vmatprep.subr.mxu0 0.0
    %828 = vmatpush1.msra.mxu0 0.0
    %829 = vmatprep.subr.mxu0 0.0
    %830 = vmatpush1.msra.mxu0 0.0
    %831 = vmatprep.subr.mxu0 0.0
    %832 = vmatpush1.msra.mxu0 0.0
    %833 = vmatprep.subr.mxu0 0.0
    %834 = vmatpush1.msra.mxu0 0.0
    %835 = vmatprep.subr.mxu0 0.0
    %836 = vmatpush1.msra.mxu0 0.0
    %837 = vmatprep.subr.mxu0 0.0
    %838 = vmatpush1.msra.mxu0 0.0
    %839 = vmatprep.subr.mxu0 0.0
    %840 = vmatpush1.msra.mxu0 0.0
    %841 = vmatprep.subr.mxu0 0.0
    %842 = vmatpush1.msra.mxu0 0.0
    %843 = vmatprep.subr.mxu0 0.0
    %844 = vmatpush1.msra.mxu0 0.0
    %845 = vmatprep.subr.mxu0 0.0
    %846 = vmatpush1.msra.mxu0 0.0
    %847 = vmatprep.subr.mxu0 0.0
    %848 = vmatpush1.msra.mxu0 0.0
    %849 = vmatprep.subr.mxu0 0.0
    %850 = vmatpush1.msra.mxu0 0.0
    %851 = vmatprep.subr.mxu0 0.0
    %852 = vmatpush1.msra.mxu0 0.0
    %853 = vmatprep.subr.mxu0 0.0
    %854 = vmatpush1.msra.mxu0 0.0
    %855 = vmatprep.subr.mxu0 0.0
    %856 = vmatpush1.msra.mxu0 0.0
    %857 = vmatprep.subr.mxu0 0.0
    %v858 = vand.u32 %v820, 4294901760
    %859 = vmatpush1.msra.mxu0 %v858
    %860 = vmatprep.subr.mxu0 0.0
    %861 = vmatpush2.msra.mxu0 0.0
    %862 = vmatprep.subr.mxu0 0.0
    %863 = vmatpush2.msra.mxu0 0.0
    %864 = vmatprep.subr.mxu0 0.0
    %865 = vmatpush2.msra.mxu0 0.0
    %866 = vmatprep.subr.mxu0 0.0
    %867 = vmatpush2.msra.mxu0 0.0
    %868 = vmatprep.subr.mxu0 0.0
    %869 = vmatpush2.msra.mxu0 0.0
    %870 = vmatprep.subr.mxu0 0.0
    %871 = vmatpush2.msra.mxu0 0.0
    %872 = vmatprep.subr.mxu0 0.0
    %873 = vmatpush2.msra.mxu0 0.0
    %874 = vmatprep.subr.mxu0 0.0
    %875 = vmatpush2.msra.mxu0 0.0
    %876 = vmatprep.subr.mxu0 0.0
    %877 = vmatpush2.msra.mxu0 0.0
    %878 = vmatprep.subr.mxu0 0.0
    %879 = vmatpush2.msra.mxu0 0.0
    %880 = vmatprep.subr.mxu0 0.0
    %881 = vmatpush2.msra.mxu0 0.0
    %882 = vmatprep.subr.mxu0 0.0
    %883 = vmatpush2.msra.mxu0 0.0
    %884 = vmatprep.subr.mxu0 0.0
    %885 = vmatpush2.msra.mxu0 0.0
    %886 = vmatprep.subr.mxu0 0.0
    %887 = vmatpush2.msra.mxu0 0.0
    %888 = vmatprep.subr.mxu0 0.0
    %889 = vmatpush2.msra.mxu0 0.0
    %890 = vmatprep.subr.mxu0 0.0
    %891 = vmatpush2.msra.mxu0 0.0
    %892 = vmatprep.mubr.f32.mxu0 0.0
    %v893 = vand.u32 %v825, 4294901760
    %v894 = vsub.f32 %v825, %v893
    %v895 = vand.u32 %v894, 4294901760
    %v896 = vsub.f32 %v894, %v895
    %v897 = vand.u32 %v896, 4294901760
    %898 = vmatmul.mubr.f32.gmra.mxu0 %v897
    %v899 = vpop.f32.mrf.mxu0
    %v900 = vadd.f32 0.0, %v899
    %v901 = vpop.f32.mrf.mxu0
    %902 = vdwg.mxu0
    %903 = vmatprep.subr.mxu0 0.0
    %904 = vmatpush1.msra.mxu0 0.0
    %905 = vmatprep.subr.mxu0 0.0
    %906 = vmatpush1.msra.mxu0 0.0
    %907 = vmatprep.subr.mxu0 0.0
    %908 = vmatpush1.msra.mxu0 0.0
    %909 = vmatprep.subr.mxu0 0.0
    %910 = vmatpush1.msra.mxu0 0.0
    %911 = vmatprep.subr.mxu0 0.0
    %912 = vmatpush1.msra.mxu0 0.0
    %913 = vmatprep.subr.mxu0 0.0
    %914 = vmatpush1.msra.mxu0 0.0
    %915 = vmatprep.subr.mxu0 0.0
    %916 = vmatpush1.msra.mxu0 0.0
    %917 = vmatprep.subr.mxu0 0.0
    %918 = vmatpush1.msra.mxu0 0.0
    %919 = vmatprep.subr.mxu0 0.0
    %920 = vmatpush1.msra.mxu0 0.0
    %921 = vmatprep.subr.mxu0 0.0
    %922 = vmatpush1.msra.mxu0 0.0
    %923 = vmatprep.subr.mxu0 0.0
    %924 = vmatpush1.msra.mxu0 0.0
    %925 = vmatprep.subr.mxu0 0.0
    %926 = vmatpush1.msra.mxu0 0.0
    %927 = vmatprep.subr.mxu0 0.0
    %928 = vmatpush1.msra.mxu0 0.0
    %929 = vmatprep.subr.mxu0 0.0
    %930 = vmatpush1.msra.mxu0 0.0
    %931 = vmatprep.subr.mxu0 0.0
    %932 = vmatpush1.msra.mxu0 0.0
    %933 = vmatprep.subr.mxu0 0.0
    %v934 = vand.u32 %v820, 4294901760
    %v935 = vsub.f32 %v820, %v934
    %v936 = vand.u32 %v935, 4294901760
    %v937 = vsub.f32 %v935, %v936
    %v938 = vand.u32 %v937, 4294901760
    %939 = vmatpush1.msra.mxu0 %v938
    %940 = vmatprep.subr.mxu0 0.0
    %941 = vmatpush2.msra.mxu0 0.0
    %942 = vmatprep.subr.mxu0 0.0
    %943 = vmatpush2.msra.mxu0 0.0
    %944 = vmatprep.subr.mxu0 0.0
    %945 = vmatpush2.msra.mxu0 0.0
    %946 = vmatprep.subr.mxu0 0.0
    %947 = vmatpush2.msra.mxu0 0.0
    %948 = vmatprep.subr.mxu0 0.0
    %949 = vmatpush2.msra.mxu0 0.0
    %950 = vmatprep.subr.mxu0 0.0
    %951 = vmatpush2.msra.mxu0 0.0
    %952 = vmatprep.subr.mxu0 0.0
    %953 = vmatpush2.msra.mxu0 0.0
    %954 = vmatprep.subr.mxu0 0.0
    %955 = vmatpush2.msra.mxu0 0.0
    %956 = vmatprep.subr.mxu0 0.0
    %957 = vmatpush2.msra.mxu0 0.0
    %958 = vmatprep.subr.mxu0 0.0
    %959 = vmatpush2.msra.mxu0 0.0
    %960 = vmatprep.subr.mxu0 0.0
    %961 = vmatpush2.msra.mxu0 0.0
    %962 = vmatprep.subr.mxu0 0.0
    %963 = vmatpush2.msra.mxu0 0.0
    %964 = vmatprep.subr.mxu0 0.0
    %965 = vmatpush2.msra.mxu0 0.0
    %966 = vmatprep.subr.mxu0 0.0
    %967 = vmatpush2.msra.mxu0 0.0
    %968 = vmatprep.subr.mxu0 0.0
    %969 = vmatpush2.msra.mxu0 0.0
    %970 = vmatprep.subr.mxu0 0.0
    %971 = vmatpush2.msra.mxu0 0.0
    %972 = vmatprep.mubr.f32.mxu0 0.0
    %v973 = vand.u32 %v825, 4294901760
    %974 = vmatmul.mubr.f32.gmra.mxu0 %v973
    %v975 = vpop.f32.mrf.mxu0
    %v976 = vadd.f32 %v900, %v975
    %v977 = vpop.f32.mrf.mxu0
    %978 = vdwg.mxu0
    %979 = vmatprep.subr.mxu0 0.0
    %980 = vmatpush1.msra.mxu0 0.0
    %981 = vmatprep.subr.mxu0 0.0
    %982 = vmatpush1.msra.mxu0 0.0
    %983 = vmatprep.subr.mxu0 0.0
    %984 = vmatpush1.msra.mxu0 0.0
    %985 = vmatprep.subr.mxu0 0.0
    %986 = vmatpush1.msra.mxu0 0.0
    %987 = vmatprep.subr.mxu0 0.0
    %988 = vmatpush1.msra.mxu0 0.0
    %989 = vmatprep.subr.mxu0 0.0
    %990 = vmatpush1.msra.mxu0 0.0
    %991 = vmatprep.subr.mxu0 0.0
    %992 = vmatpush1.msra.mxu0 0.0
    %993 = vmatprep.subr.mxu0 0.0
    %994 = vmatpush1.msra.mxu0 0.0
    %995 = vmatprep.subr.mxu0 0.0
    %996 = vmatpush1.msra.mxu0 0.0
    %997 = vmatprep.subr.mxu0 0.0
    %998 = vmatpush1.msra.mxu0 0.0
    %999 = vmatprep.subr.mxu0 0.0
    %1000 = vmatpush1.msra.mxu0 0.0
    %1001 = vmatprep.subr.mxu0 0.0
    %1002 = vmatpush1.msra.mxu0 0.0
    %1003 = vmatprep.subr.mxu0 0.0
    %1004 = vmatpush1.msra.mxu0 0.0
    %1005 = vmatprep.subr.mxu0 0.0
    %1006 = vmatpush1.msra.mxu0 0.0
    %1007 = vmatprep.subr.mxu0 0.0
    %1008 = vmatpush1.msra.mxu0 0.0
    %1009 = vmatprep.subr.mxu0 0.0
    %v1010 = vand.u32 %v820, 4294901760
    %v1011 = vsub.f32 %v820, %v1010
    %1012 = vmatpush1.msra.mxu0 %v1011
    %1013 = vmatprep.subr.mxu0 0.0
    %1014 = vmatpush2.msra.mxu0 0.0
    %1015 = vmatprep.subr.mxu0 0.0
    %1016 = vmatpush2.msra.mxu0 0.0
    %1017 = vmatprep.subr.mxu0 0.0
    %1018 = vmatpush2.msra.mxu0 0.0
    %1019 = vmatprep.subr.mxu0 0.0
    %1020 = vmatpush2.msra.mxu0 0.0
    %1021 = vmatprep.subr.mxu0 0.0
    %1022 = vmatpush2.msra.mxu0 0.0
    %1023 = vmatprep.subr.mxu0 0.0
    %1024 = vmatpush2.msra.mxu0 0.0
    %1025 = vmatprep.subr.mxu0 0.0
    %1026 = vmatpush2.msra.mxu0 0.0
    %1027 = vmatprep.subr.mxu0 0.0
    %1028 = vmatpush2.msra.mxu0 0.0
    %1029 = vmatprep.subr.mxu0 0.0
    %1030 = vmatpush2.msra.mxu0 0.0
    %1031 = vmatprep.subr.mxu0 0.0
    %1032 = vmatpush2.msra.mxu0 0.0
    %1033 = vmatprep.subr.mxu0 0.0
    %1034 = vmatpush2.msra.mxu0 0.0
    %1035 = vmatprep.subr.mxu0 0.0
    %1036 = vmatpush2.msra.mxu0 0.0
    %1037 = vmatprep.subr.mxu0 0.0
    %1038 = vmatpush2.msra.mxu0 0.0
    %1039 = vmatprep.subr.mxu0 0.0
    %1040 = vmatpush2.msra.mxu0 0.0
    %1041 = vmatprep.subr.mxu0 0.0
    %1042 = vmatpush2.msra.mxu0 0.0
    %1043 = vmatprep.subr.mxu0 0.0
    %1044 = vmatpush2.msra.mxu0 0.0
    %1045 = vmatprep.mubr.f32.mxu0 0.0
    %v1046 = vand.u32 %v825, 4294901760
    %v1047 = vsub.f32 %v825, %v1046
    %1048 = vmatmul.mubr.f32.gmra.mxu0 %v1047
    %v1049 = vpop.f32.mrf.mxu0
    %v1050 = vadd.f32 %v976, %v1049
    %v1051 = vpop.f32.mrf.mxu0
    %1052 = vdwg.mxu0
    %1053 = vmatprep.subr.mxu0 0.0
    %1054 = vmatpush1.msra.mxu0 0.0
    %1055 = vmatprep.subr.mxu0 0.0
    %1056 = vmatpush1.msra.mxu0 0.0
    %1057 = vmatprep.subr.mxu0 0.0
    %1058 = vmatpush1.msra.mxu0 0.0
    %1059 = vmatprep.subr.mxu0 0.0
    %1060 = vmatpush1.msra.mxu0 0.0
    %1061 = vmatprep.subr.mxu0 0.0
    %1062 = vmatpush1.msra.mxu0 0.0
    %1063 = vmatprep.subr.mxu0 0.0
    %1064 = vmatpush1.msra.mxu0 0.0
    %1065 = vmatprep.subr.mxu0 0.0
    %1066 = vmatpush1.msra.mxu0 0.0
    %1067 = vmatprep.subr.mxu0 0.0
    %1068 = vmatpush1.msra.mxu0 0.0
    %1069 = vmatprep.subr.mxu0 0.0
    %1070 = vmatpush1.msra.mxu0 0.0
    %1071 = vmatprep.subr.mxu0 0.0
    %1072 = vmatpush1.msra.mxu0 0.0
    %1073 = vmatprep.subr.mxu0 0.0
    %1074 = vmatpush1.msra.mxu0 0.0
    %1075 = vmatprep.subr.mxu0 0.0
    %1076 = vmatpush1.msra.mxu0 0.0
    %1077 = vmatprep.subr.mxu0 0.0
    %1078 = vmatpush1.msra.mxu0 0.0
    %1079 = vmatprep.subr.mxu0 0.0
    %1080 = vmatpush1.msra.mxu0 0.0
    %1081 = vmatprep.subr.mxu0 0.0
    %1082 = vmatpush1.msra.mxu0 0.0
    %1083 = vmatprep.subr.mxu0 0.0
    %v1084 = vand.u32 %v820, 4294901760
    %1085 = vmatpush1.msra.mxu0 %v1084
    %1086 = vmatprep.subr.mxu0 0.0
    %1087 = vmatpush2.msra.mxu0 0.0
    %1088 = vmatprep.subr.mxu0 0.0
    %1089 = vmatpush2.msra.mxu0 0.0
    %1090 = vmatprep.subr.mxu0 0.0
    %1091 = vmatpush2.msra.mxu0 0.0
    %1092 = vmatprep.subr.mxu0 0.0
    %1093 = vmatpush2.msra.mxu0 0.0
    %1094 = vmatprep.subr.mxu0 0.0
    %1095 = vmatpush2.msra.mxu0 0.0
    %1096 = vmatprep.subr.mxu0 0.0
    %1097 = vmatpush2.msra.mxu0 0.0
    %1098 = vmatprep.subr.mxu0 0.0
    %1099 = vmatpush2.msra.mxu0 0.0
    %1100 = vmatprep.subr.mxu0 0.0
    %1101 = vmatpush2.msra.mxu0 0.0
    %1102 = vmatprep.subr.mxu0 0.0
    %1103 = vmatpush2.msra.mxu0 0.0
    %1104 = vmatprep.subr.mxu0 0.0
    %1105 = vmatpush2.msra.mxu0 0.0
    %1106 = vmatprep.subr.mxu0 0.0
    %1107 = vmatpush2.msra.mxu0 0.0
    %1108 = vmatprep.subr.mxu0 0.0
    %1109 = vmatpush2.msra.mxu0 0.0
    %1110 = vmatprep.subr.mxu0 0.0
    %1111 = vmatpush2.msra.mxu0 0.0
    %1112 = vmatprep.subr.mxu0 0.0
    %1113 = vmatpush2.msra.mxu0 0.0
    %1114 = vmatprep.subr.mxu0 0.0
    %1115 = vmatpush2.msra.mxu0 0.0
    %1116 = vmatprep.subr.mxu0 0.0
    %1117 = vmatpush2.msra.mxu0 0.0
    %1118 = vmatprep.mubr.f32.mxu0 0.0
    %v1119 = vand.u32 %v825, 4294901760
    %v1120 = vsub.f32 %v825, %v1119
    %v1121 = vand.u32 %v1120, 4294901760
    %1122 = vmatmul.mubr.f32.gmra.mxu0 %v1121
    %v1123 = vpop.f32.mrf.mxu0
    %v1124 = vadd.f32 %v1050, %v1123
    %v1125 = vpop.f32.mrf.mxu0
    %1126 = vdwg.mxu0
    %1127 = vmatprep.subr.mxu0 0.0
    %1128 = vmatpush1.msra.mxu0 0.0
    %1129 = vmatprep.subr.mxu0 0.0
    %1130 = vmatpush1.msra.mxu0 0.0
    %1131 = vmatprep.subr.mxu0 0.0
    %1132 = vmatpush1.msra.mxu0 0.0
    %1133 = vmatprep.subr.mxu0 0.0
    %1134 = vmatpush1.msra.mxu0 0.0
    %1135 = vmatprep.subr.mxu0 0.0
    %1136 = vmatpush1.msra.mxu0 0.0
    %1137 = vmatprep.subr.mxu0 0.0
    %1138 = vmatpush1.msra.mxu0 0.0
    %1139 = vmatprep.subr.mxu0 0.0
    %1140 = vmatpush1.msra.mxu0 0.0
    %1141 = vmatprep.subr.mxu0 0.0
    %1142 = vmatpush1.msra.mxu0 0.0
    %1143 = vmatprep.subr.mxu0 0.0
    %1144 = vmatpush1.msra.mxu0 0.0
    %1145 = vmatprep.subr.mxu0 0.0
    %1146 = vmatpush1.msra.mxu0 0.0
    %1147 = vmatprep.subr.mxu0 0.0
    %1148 = vmatpush1.msra.mxu0 0.0
    %1149 = vmatprep.subr.mxu0 0.0
    %1150 = vmatpush1.msra.mxu0 0.0
    %1151 = vmatprep.subr.mxu0 0.0
    %1152 = vmatpush1.msra.mxu0 0.0
    %1153 = vmatprep.subr.mxu0 0.0
    %1154 = vmatpush1.msra.mxu0 0.0
    %1155 = vmatprep.subr.mxu0 0.0
    %1156 = vmatpush1.msra.mxu0 0.0
    %1157 = vmatprep.subr.mxu0 0.0
    %v1158 = vand.u32 %v820, 4294901760
    %v1159 = vsub.f32 %v820, %v1158
    %v1160 = vand.u32 %v1159, 4294901760
    %1161 = vmatpush1.msra.mxu0 %v1160
    %1162 = vmatprep.subr.mxu0 0.0
    %1163 = vmatpush2.msra.mxu0 0.0
    %1164 = vmatprep.subr.mxu0 0.0
    %1165 = vmatpush2.msra.mxu0 0.0
    %1166 = vmatprep.subr.mxu0 0.0
    %1167 = vmatpush2.msra.mxu0 0.0
    %1168 = vmatprep.subr.mxu0 0.0
    %1169 = vmatpush2.msra.mxu0 0.0
    %1170 = vmatprep.subr.mxu0 0.0
    %1171 = vmatpush2.msra.mxu0 0.0
    %1172 = vmatprep.subr.mxu0 0.0
    %1173 = vmatpush2.msra.mxu0 0.0
    %1174 = vmatprep.subr.mxu0 0.0
    %1175 = vmatpush2.msra.mxu0 0.0
    %1176 = vmatprep.subr.mxu0 0.0
    %1177 = vmatpush2.msra.mxu0 0.0
    %1178 = vmatprep.subr.mxu0 0.0
    %1179 = vmatpush2.msra.mxu0 0.0
    %1180 = vmatprep.subr.mxu0 0.0
    %1181 = vmatpush2.msra.mxu0 0.0
    %1182 = vmatprep.subr.mxu0 0.0
    %1183 = vmatpush2.msra.mxu0 0.0
    %1184 = vmatprep.subr.mxu0 0.0
    %1185 = vmatpush2.msra.mxu0 0.0
    %1186 = vmatprep.subr.mxu0 0.0
    %1187 = vmatpush2.msra.mxu0 0.0
    %1188 = vmatprep.subr.mxu0 0.0
    %1189 = vmatpush2.msra.mxu0 0.0
    %1190 = vmatprep.subr.mxu0 0.0
    %1191 = vmatpush2.msra.mxu0 0.0
    %1192 = vmatprep.subr.mxu0 0.0
    %1193 = vmatpush2.msra.mxu0 0.0
    %1194 = vmatprep.mubr.f32.mxu0 0.0
    %v1195 = vand.u32 %v825, 4294901760
    %1196 = vmatmul.mubr.f32.gmra.mxu0 %v1195
    %v1197 = vpop.f32.mrf.mxu0
    %v1198 = vadd.f32 %v1124, %v1197
    %v1199 = vpop.f32.mrf.mxu0
    %1200 = vdwg.mxu0
    %1201 = vmatprep.subr.mxu0 0.0
    %1202 = vmatpush1.msra.mxu0 0.0
    %1203 = vmatprep.subr.mxu0 0.0
    %1204 = vmatpush1.msra.mxu0 0.0
    %1205 = vmatprep.subr.mxu0 0.0
    %1206 = vmatpush1.msra.mxu0 0.0
    %1207 = vmatprep.subr.mxu0 0.0
    %1208 = vmatpush1.msra.mxu0 0.0
    %1209 = vmatprep.subr.mxu0 0.0
    %1210 = vmatpush1.msra.mxu0 0.0
    %1211 = vmatprep.subr.mxu0 0.0
    %1212 = vmatpush1.msra.mxu0 0.0
    %1213 = vmatprep.subr.mxu0 0.0
    %1214 = vmatpush1.msra.mxu0 0.0
    %1215 = vmatprep.subr.mxu0 0.0
    %1216 = vmatpush1.msra.mxu0 0.0
    %1217 = vmatprep.subr.mxu0 0.0
    %1218 = vmatpush1.msra.mxu0 0.0
    %1219 = vmatprep.subr.mxu0 0.0
    %1220 = vmatpush1.msra.mxu0 0.0
    %1221 = vmatprep.subr.mxu0 0.0
    %1222 = vmatpush1.msra.mxu0 0.0
    %1223 = vmatprep.subr.mxu0 0.0
    %1224 = vmatpush1.msra.mxu0 0.0
    %1225 = vmatprep.subr.mxu0 0.0
    %1226 = vmatpush1.msra.mxu0 0.0
    %1227 = vmatprep.subr.mxu0 0.0
    %1228 = vmatpush1.msra.mxu0 0.0
    %1229 = vmatprep.subr.mxu0 0.0
    %1230 = vmatpush1.msra.mxu0 0.0
    %1231 = vmatprep.subr.mxu0 0.0
    %v1232 = vand.u32 %v820, 4294901760
    %1233 = vmatpush1.msra.mxu0 %v1232
    %1234 = vmatprep.subr.mxu0 0.0
    %1235 = vmatpush2.msra.mxu0 0.0
    %1236 = vmatprep.subr.mxu0 0.0
    %1237 = vmatpush2.msra.mxu0 0.0
    %1238 = vmatprep.subr.mxu0 0.0
    %1239 = vmatpush2.msra.mxu0 0.0
    %1240 = vmatprep.subr.mxu0 0.0
    %1241 = vmatpush2.msra.mxu0 0.0
    %1242 = vmatprep.subr.mxu0 0.0
    %1243 = vmatpush2.msra.mxu0 0.0
    %1244 = vmatprep.subr.mxu0 0.0
    %1245 = vmatpush2.msra.mxu0 0.0
    %1246 = vmatprep.subr.mxu0 0.0
    %1247 = vmatpush2.msra.mxu0 0.0
    %1248 = vmatprep.subr.mxu0 0.0
    %1249 = vmatpush2.msra.mxu0 0.0
    %1250 = vmatprep.subr.mxu0 0.0
    %1251 = vmatpush2.msra.mxu0 0.0
    %1252 = vmatprep.subr.mxu0 0.0
    %1253 = vmatpush2.msra.mxu0 0.0
    %1254 = vmatprep.subr.mxu0 0.0
    %1255 = vmatpush2.msra.mxu0 0.0
    %1256 = vmatprep.subr.mxu0 0.0
    %1257 = vmatpush2.msra.mxu0 0.0
    %1258 = vmatprep.subr.mxu0 0.0
    %1259 = vmatpush2.msra.mxu0 0.0
    %1260 = vmatprep.subr.mxu0 0.0
    %1261 = vmatpush2.msra.mxu0 0.0
    %1262 = vmatprep.subr.mxu0 0.0
    %1263 = vmatpush2.msra.mxu0 0.0
    %1264 = vmatprep.subr.mxu0 0.0
    %1265 = vmatpush2.msra.mxu0 0.0
    %1266 = vmatprep.mubr.f32.mxu0 0.0
    %v1267 = vand.u32 %v825, 4294901760
    %1268 = vmatmul.mubr.f32.gmra.mxu0 %v1267
    %v1269 = vpop.f32.mrf.mxu0
    %v1270 = vadd.f32 %v1198, %v1269
    %v1271 = vpop.f32.mrf.mxu0
    %1272 = vdwg.mxu0
    %v1273 = vadd.f32 %v814, %v1270
    %v1274 = vsub.f32 %v135, %v147
    %v1275 = vmul.f32 %v1274, 1.442695
    %v1276 = vpow.pop %v1275
    %v1277 = vmul.f32 %v136, %v1276
    %v1279 = vlaneseq
    %v1280 = vshrl.u32 %v1279, 7
    %v1281 = vsub.s32 0, %v1280
    %v1282 = vrot.slane %v1277, %v1281
    %1283 = vset.pattern.permute.xlu0 0
    %1284 = vperm.xlu0 %1283, %v1282
    %v1285 = vpop.permute.xlu0 %1284
    %v1287 = vadd.f32 %v1285, %v1273
    %v1288 = vlog2.pop %v1287
    %v1289 = vmul.f32 %v1288, 0.6931472
    %v1290 = vadd.f32 %v155, %v1289
    %v1291 = vld [vmem:[#allocation4] sm:$0xff]
    %v1292 = vsub.f32 %v1290, %v133
    %v1293 = vmul.f32 %v1292, %v134
    %v1294 = vadd.f32 %v1291, %v1293
    %1295 = vst [vmem:[#allocation4] sm:$0xff] %v1294
    %vm1296 = vcmask 0
    %1297 = vst.msk [vmem:[#allocation2] sm:$0x1] %vm1296, %v147
    %v1299 = vcombine.high %v1273, %v1273
    %v1301 = vunpack.c.l.s4 1966171168
    %v1302 = vunpack.c.0.s8 %v1301
    %v1303 = vlaneseq
    %v1304 = vshrl.u32 %v1303, 7
    %v1305 = vsub.s32 %v1302, %v1304
    %v1306 = vrot.slane %v1299, %v1305
    %v1307 = vcombine.high %v1306, %v1306
    %v1309 = vunpack.c.l.s4 1966171168
    %v1310 = vunpack.c.0.s8 %v1309
    %v1311 = vlaneseq
    %v1312 = vshrl.u32 %v1311, 7
    %v1313 = vsub.s32 %v1310, %v1312
    %v1314 = vrot.slane %v1307, %v1313
    %v1315 = vcombine.high %v1314, %v1314
    %1316 = vrot.lane.b32.xlu0 %v1315, 1
    %v1317 = vpop.permute.xlu0 %1316
    %v1319 = vadd.f32 %v1277, %v1317
    %1320 = vst.msk [vmem:[#allocation3] sm:$0x1] %vm1296, %v1319
    // Predicated region
    $region22: #{tpu_custom_call.1} parent=1 // pred_check
      %p1321 = pneg %p36
    $region23: #{tpu_custom_call.1} parent=1 // pred_check_branch
      %1323 = sbr.rel (%p1321) target = $region25
    $region24: #{tpu_custom_call.1} parent=1 // pred_region
      %v1324 = vld [vmem:[#allocation4] sm:$0xff]
      %1325 = vadd.xlane.f32.xlu0 %v1324
      %v1326 = vpop.xlane.xlu0 %1325
      %v1327 = vrot.slane %v1326, 4
      %v1328 = vadd.f32 %v1326, %v1327
      %v1329 = vrot.slane %v1328, 2
      %v1330 = vadd.f32 %v1328, %v1329
      %v1331 = vrot.slane %v1330, 1
      %v1332 = vadd.f32 %v1330, %v1331
      %s1333 = vtos %v1332
      %v1334 = vstv %s1333
      %1335 = vst.msk [vmem:[#allocation12] sm:$0x1] %vm1296, %v1334
    $region25: #{tpu_custom_call.1} parent=1 // pred_fallthru
      _
    // Predicated region
    $region26: #{tpu_custom_call.1} parent=1 // pred_check
      _
    $region27: #{tpu_custom_call.1} parent=1 // pred_check_branch
      %1337 = sbr.rel (0) target = $region29
    $region28: #{tpu_custom_call.1} parent=1 // pred_region
      %s1339 = ssub.s32 16, 16
      %1340 = vsyncadd [#allocation9], %s1339
      %s1342 = sshll.u32 [#allocation12], 4
      %s1343 = int_to_ptr.vmem [resolvable:$true] %s1342
      %1345 = dma.vmem_to_hbm [thread:$0]  %s1343, 16, %s2, [#allocation9]
    $region29: #{tpu_custom_call.1} parent=1 // pred_fallthru
      _
    // Predicated region
    $region30: #{tpu_custom_call.1} parent=1 // pred_check
      _
    $region31: #{tpu_custom_call.1} parent=1 // pred_check_branch
      %1347 = sbr.rel (0) target = $region33
    $region32: #{tpu_custom_call.1} parent=1 // pred_region
      %1348 = dma.done [#allocation9], 16
    $region33: #{tpu_custom_call.1} parent=1 // pred_fallthru
      _
    %1349 = vsyncpa [#allocation8], 1
    %1350 = vsyncpa [#allocation11], 1
    %1351 = vsyncpa [#allocation9], 1

</llo_original>
